<compile_context>
chip_gen: v6e
topology: v6e:2x2x1
jax: 0.10.0
libtpu: 0.0.40
codegen_flags: <defaults>
</compile_context>

<pallas_src>
import functools

import jax
import jax.numpy as jnp
import numpy as np
from jax.experimental import pallas as pl
from jax.experimental.pallas import tpu as pltpu


def _cnn_seq_emb_kernel(x_ref, mask_ref, wconv_ref, bconv_ref,
                        wa_ref, ba_ref, va_ref, ca_ref, out_ref):
    # x_ref    : (Bt, S, Din)        one batch tile
    # mask_ref : (Bt*S, 1)  f32      flattened sequence mask
    # wconv_ref: (3*Din, Dout)       folded conv weight (taps concatenated on K)
    # bconv_ref: (1, Dout)  f32
    # wa_ref   : (Dout, H), ba_ref: (1, H)
    # va_ref   : (H, 1),    ca_ref: (1, 1) in SMEM
    # out_ref  : (Bt, Dout)
    Bt, S, Din = x_ref.shape
    Dout = out_ref.shape[1]
    R = Bt * S
    mm = wconv_ref.dtype                      # matmul operand dtype (f32 / bf16)

    xf = x_ref[...].reshape(R, Din)           # (R, Din); layout-trivial for S % 8 == 0
    m = mask_ref[...]                         # (R, 1) float mask

    # Sequence position (0..S-1) of every flat row, used to zero the rows that
    # pltpu.roll wrapped across sequence / batch boundaries.
    s_idx = jax.lax.broadcasted_iota(jnp.int32, (Bt, S, 1), 1).reshape(R, 1)

    # --- Conv1d(k=3, 'same'): shifted copies via XLU sublane roll ------------
    x_prev = jnp.where(s_idx == 0, 0.0, pltpu.roll(xf, 1, 0))       # x[t-1]
    x_next = jnp.where(s_idx == S - 1, 0.0, pltpu.roll(xf, R - 1, 0))  # x[t+1] (roll by -1)
    xcat = jnp.concatenate([x_prev, xf, x_next], axis=-1)           # (R, 3*Din)

    # Single MXU matmul over K = 3*Din, f32 accumulation.
    h = jnp.dot(xcat.astype(mm), wconv_ref[...],
                preferred_element_type=jnp.float32) + bconv_ref[...]  # (R, Dout)
    h = jnp.maximum(h, 0.0) * m                                       # ReLU + mask

    # Dropout(p=0.2): identity at inference.

    # --- Additive attention: v^T tanh(W h + b) + c, masked softmax over S ---
    a = jnp.tanh(jnp.dot(h.astype(mm), wa_ref[...],
                         preferred_element_type=jnp.float32) + ba_ref[...])  # (R, H)
    scores = jnp.dot(a.astype(mm), va_ref[...],
                     preferred_element_type=jnp.float32) + ca_ref[0, 0]      # (R, 1)
    scores = jnp.where(m > 0, scores, -1e9)

    s3 = scores.reshape(Bt, S, 1)                                   # per-sequence view
    e = jnp.exp(s3 - jnp.max(s3, axis=1, keepdims=True))
    w = e * pl.reciprocal(jnp.sum(e, axis=1, keepdims=True), approx=True)    # (Bt, S, 1)

    # --- Weighted sum over the sequence (sublane reduce) ---------------------
    out = jnp.sum(h.reshape(Bt, S, Dout) * w, axis=1)               # (Bt, Dout)
    out_ref[...] = out.astype(out_ref.dtype)


@functools.partial(jax.jit, static_argnames=("batch_tile", "matmul_dtype"))
def cnn_sequence_embedding(x, mask, params, *, batch_tile=16,
                           matmul_dtype=jnp.float32):
    """x: (B, S, Din) f32, mask: (B, S) -> (B, Dout) f32.

    batch_tile (Bt) sizing: per-step VMEM is roughly
      2*Bt*S*Din*4 (double-buffered x) + Bt*S*(3*Din + Dout + H)*4 (intermediates)
      + weights.  Keep this well under the scoped VMEM limit; v7x has 64 MiB
    total VMEM (vs 128 MiB on v5e/v6e), so do not reuse a v6e-tuned Bt there.
    Also keep the post-tiling grid >= 2 so both v7x TensorCores get work.
    """
    B, S, Din = x.shape
    K, _, Dout = params["w_conv"].shape
    H = params["w_attn"].shape[1]
    if K != 3:
        raise NotImplementedError("only kernel_size=3 is implemented")

    Bt = min(batch_tile, B)
    if Bt < B and Bt % 8 != 0:
        raise ValueError("batch_tile must be a multiple of 8 when it tiles the batch")
    Bp = pl.cdiv(B, Bt) * Bt
    if Bp != B:                      # pad batch; padded rows are fully masked -> 0 output
        x = jnp.pad(x, ((0, Bp - B), (0, 0), (0, 0)))
        mask = jnp.pad(mask, ((0, Bp - B), (0, 0)))

    # Flattened mask: one contiguous (Bt*S, 1) DMA per grid step, no in-kernel relayout.
    mask_flat = mask.reshape(Bp * S, 1).astype(jnp.float32)

    # Fold the 3 conv taps into a single (3*Din, Dout) weight; cast only the
    # matmul-operand weights (elementwise math and accumulation stay f32).
    w_conv = params["w_conv"].reshape(K * Din, Dout).astype(matmul_dtype)
    w_attn = params["w_attn"].astype(matmul_dtype)
    v_attn = params["v_attn"].astype(matmul_dtype)
    b_conv = params["b_conv"].astype(jnp.float32)
    b_attn = params["b_attn"].astype(jnp.float32)
    c_attn = params["c_attn"].astype(jnp.float32)

    grid_spec = pltpu.PrefetchScalarGridSpec(
        num_scalar_prefetch=0,
        grid=(Bp // Bt,),
        in_specs=[
            pl.BlockSpec((Bt, S, Din), lambda b: (b, 0, 0)),        # x batch tile
            pl.BlockSpec((Bt * S, 1), lambda b: (b, 0)),            # mask tile (flat)
            pl.BlockSpec((K * Din, Dout), lambda b: (0, 0)),        # folded conv weight
            pl.BlockSpec((1, Dout), lambda b: (0, 0)),              # conv bias
            pl.BlockSpec((Dout, H), lambda b: (0, 0)),              # attn W1
            pl.BlockSpec((1, H), lambda b: (0, 0)),                 # attn b1
            pl.BlockSpec((H, 1), lambda b: (0, 0)),                 # attn v
            pl.BlockSpec(memory_space=pltpu.MemorySpace.SMEM),      # attn c scalar
        ],
        out_specs=pl.BlockSpec((Bt, Dout), lambda b: (b, 0)),
    )

    out = pl.pallas_call(
        _cnn_seq_emb_kernel,
        out_shape=jax.ShapeDtypeStruct((Bp, Dout), jnp.float32),
        grid_spec=grid_spec,
        compiler_params=pltpu.CompilerParams(
            dimension_semantics=("parallel",)),     # megacore-shardable batch axis
    )(x, mask_flat, w_conv, b_conv, w_attn, b_attn, v_attn, c_attn)
    return out[:B]


def reference(x, mask, p):
    """Pure-JAX reference of the same forward pass (eval mode, f32)."""
    xp = jnp.pad(x, ((0, 0), (1, 1), (0, 0)))
    h = (xp[:, :-2] @ p["w_conv"][0]
         + xp[:, 1:-1] @ p["w_conv"][1]
         + xp[:, 2:] @ p["w_conv"][2]
         + p["b_conv"])
    h = jnp.maximum(h, 0.0) * mask[..., None]
    a = jnp.tanh(h @ p["w_attn"] + p["b_attn"])
    s = (a @ p["v_attn"])[..., 0] + p["c_attn"][0, 0]
    s = jnp.where(mask > 0, s, -1e9)
    w = jax.nn.softmax(s, axis=-1)
    return (h * w[..., None]).sum(axis=1)


def init_params(key, input_dim, output_dim, attn_hidden_dim, kernel_size=3):
    ks = jax.random.split(key, 6)
    scale_c = 1.0 / np.sqrt(input_dim * kernel_size)
    scale_a1 = 1.0 / np.sqrt(output_dim)
    scale_a2 = 1.0 / np.sqrt(attn_hidden_dim)
    return {
        # (K, Din, Dout): w_jax[k, i, o] == torch conv.weight[o, i, k]
        "w_conv": jax.random.uniform(ks[0], (kernel_size, input_dim, output_dim),
                                     jnp.float32, -scale_c, scale_c),
        "b_conv": jax.random.uniform(ks[1], (1, output_dim),
                                     jnp.float32, -scale_c, scale_c),
        "w_attn": jax.random.uniform(ks[2], (output_dim, attn_hidden_dim),
                                     jnp.float32, -scale_a1, scale_a1),
        "b_attn": jax.random.uniform(ks[3], (1, attn_hidden_dim),
                                     jnp.float32, -scale_a1, scale_a1),
        "v_attn": jax.random.uniform(ks[4], (attn_hidden_dim, 1),
                                     jnp.float32, -scale_a2, scale_a2),
        "c_attn": jax.random.uniform(ks[5], (1, 1),
                                     jnp.float32, -scale_a2, scale_a2),
    }


if __name__ == "__main__":
    # Small synthetic shapes: Bt*S = 128 MXU rows per step, 2 grid steps,
    # lane-dense (Bt, 128) output block.
    B, S, Din, Dout, H = 32, 8, 32, 128, 64
    Bt = 16

    key = jax.random.PRNGKey(0)
    kx, kp, kl = jax.random.split(key, 3)
    x = jax.random.normal(kx, (B, S, Din), dtype=jnp.float32)

    # Random sequence lengths, forcing full-length and fully-padded edge cases.
    lengths = jax.random.randint(kl, (B,), 0, S + 1)
    lengths = lengths.at[0].set(S).at[1].set(0)
    mask = (jnp.arange(S)[None, :] < lengths[:, None]).astype(jnp.float32)

    params = init_params(kp, Din, Dout, H, kernel_size=3)
    ref = jax.block_until_ready(reference(x, mask, params))

    # f32 matmul path (only the approximate EUP softmax reciprocal differs).
    out_f32 = jax.block_until_ready(
        cnn_sequence_embedding(x, mask, params, batch_tile=Bt,
                               matmul_dtype=jnp.float32))
    np.testing.assert_allclose(np.asarray(out_f32), np.asarray(ref),
                               rtol=2e-2, atol=2e-3)

    # bf16 matmul operands with f32 accumulation (v6e/v7x MXU-native path).
    out_bf16 = jax.block_until_ready(
        cnn_sequence_embedding(x, mask, params, batch_tile=Bt,
                               matmul_dtype=jnp.bfloat16))
    np.testing.assert_allclose(np.asarray(out_bf16), np.asarray(ref),
                               rtol=5e-2, atol=1e-2)

    print("KERNEL_OK")
</pallas_src>

<mosaic_0001>
module attributes {stable_mosaic.version = 11 : i64} {
  func.func @_cnn_seq_emb_kernel(%arg0: i32, %arg1: memref<16x8x32xf32, #tpu.memory_space<vmem>>, %arg2: memref<128x1xf32, #tpu.memory_space<vmem>>, %arg3: memref<96x128xf32, #tpu.memory_space<vmem>>, %arg4: memref<1x128xf32, #tpu.memory_space<vmem>>, %arg5: memref<128x64xf32, #tpu.memory_space<vmem>>, %arg6: memref<1x64xf32, #tpu.memory_space<vmem>>, %arg7: memref<64x1xf32, #tpu.memory_space<vmem>>, %arg8: memref<1x1xf32, #tpu.memory_space<smem>>, %arg9: memref<16x128xf32, #tpu.memory_space<vmem>>) attributes {dimension_semantics = [#tpu.dimension_semantics<parallel>], iteration_bounds = array<i64: 2>, scalar_prefetch = 0 : i64, scratch_operands = 0 : i64, tpu.core_type = #tpu.core_type<tc>, window_params = [{transform_indices = @transform_0, window_bounds = array<i64: 16, 8, 32>}, {transform_indices = @transform_1, window_bounds = array<i64: 128, 1>}, {pipeline_mode = #tpu.pipeline_mode<synchronous>, transform_indices = @transform_2, window_bounds = array<i64: 96, 128>}, {pipeline_mode = #tpu.pipeline_mode<synchronous>, transform_indices = @transform_3, window_bounds = array<i64: 1, 128>}, {pipeline_mode = #tpu.pipeline_mode<synchronous>, transform_indices = @transform_4, window_bounds = array<i64: 128, 64>}, {pipeline_mode = #tpu.pipeline_mode<synchronous>, transform_indices = @transform_5, window_bounds = array<i64: 1, 64>}, {pipeline_mode = #tpu.pipeline_mode<synchronous>, transform_indices = @transform_6, window_bounds = array<i64: 64, 1>}, {transform_indices = @transform_7, window_bounds = array<i64: 1, 1>}, {transform_indices = @transform_8, window_bounds = array<i64: 16, 128>}]} {
    %c0 = arith.constant 0 : index
    %c0_0 = arith.constant 0 : index
    %c0_1 = arith.constant 0 : index
    %0 = vector.load %arg1[%c0, %c0_0, %c0_1] : memref<16x8x32xf32, #tpu.memory_space<vmem>>, vector<16x8x32xf32>
    %1 = vector.shape_cast %0 : vector<16x8x32xf32> to vector<128x32xf32>
    %c0_2 = arith.constant 0 : index
    %c0_3 = arith.constant 0 : index
    %2 = vector.load %arg2[%c0_2, %c0_3] : memref<128x1xf32, #tpu.memory_space<vmem>>, vector<128x1xf32>
    %3 = tpu.iota {dimensions = array<i32: 1>} : vector<16x8x1xi32>
    %4 = vector.shape_cast %3 : vector<16x8x1xi32> to vector<128x1xi32>
    %c0_i32 = arith.constant 0 : i32
    %5 = vector.broadcast %c0_i32 : i32 to vector<128x1xi32>
    %6 = arith.cmpi eq, %4, %5 : vector<128x1xi32>
    %c1_i32 = arith.constant 1 : i32
    %7 = tpu.dynamic_rotate %1 by %c1_i32 dim 0 : vector<128x32xf32>, i32 -> vector<128x32xf32>
    %cst = arith.constant 0.000000e+00 : f32
    %8 = vector.shape_cast %6 : vector<128x1xi1> to vector<128x1xi1>
    %9 = vector.broadcast %8 : vector<128x1xi1> to vector<128x32xi1>
    %10 = vector.broadcast %cst : f32 to vector<128x32xf32>
    %11 = arith.select %9, %10, %7 : vector<128x32xi1>, vector<128x32xf32>
    %c7_i32 = arith.constant 7 : i32
    %12 = vector.broadcast %c7_i32 : i32 to vector<128x1xi32>
    %13 = arith.cmpi eq, %4, %12 : vector<128x1xi32>
    %c127_i32 = arith.constant 127 : i32
    %14 = tpu.dynamic_rotate %1 by %c127_i32 dim 0 : vector<128x32xf32>, i32 -> vector<128x32xf32>
    %cst_4 = arith.constant 0.000000e+00 : f32
    %15 = vector.shape_cast %13 : vector<128x1xi1> to vector<128x1xi1>
    %16 = vector.broadcast %15 : vector<128x1xi1> to vector<128x32xi1>
    %17 = vector.broadcast %cst_4 : f32 to vector<128x32xf32>
    %18 = arith.select %16, %17, %14 : vector<128x32xi1>, vector<128x32xf32>
    %19 = tpu.concatenate %11, %1, %18 in 1 : vector<128x32xf32>, vector<128x32xf32>, vector<128x32xf32> -> vector<128x96xf32>
    %c0_5 = arith.constant 0 : index
    %c0_6 = arith.constant 0 : index
    %20 = vector.load %arg3[%c0_5, %c0_6] : memref<96x128xf32, #tpu.memory_space<vmem>>, vector<96x128xf32>
    %cst_7 = arith.constant dense<0.000000e+00> : vector<128x128xf32>
    %21 = tpu.matmul %19, %20, %cst_7 {dimension_numbers = #tpu.dot_dimension_numbers<[1], [0], [0], [1], [0, 0, 1, 1], [], []>} : vector<128x96xf32>, vector<96x128xf32>, vector<128x128xf32> -> vector<128x128xf32>
    %c0_8 = arith.constant 0 : index
    %c0_9 = arith.constant 0 : index
    %22 = vector.load %arg4[%c0_8, %c0_9] : memref<1x128xf32, #tpu.memory_space<vmem>>, vector<1x128xf32>
    %23 = vector.broadcast %22 : vector<1x128xf32> to vector<128x128xf32>
    %24 = arith.addf %21, %23 : vector<128x128xf32>
    %cst_10 = arith.constant 0.000000e+00 : f32
    %25 = vector.broadcast %cst_10 : f32 to vector<128x128xf32>
    %26 = arith.maximumf %24, %25 : vector<128x128xf32>
    %27 = vector.broadcast %2 : vector<128x1xf32> to vector<128x128xf32>
    %28 = arith.mulf %26, %27 : vector<128x128xf32>
    %c0_11 = arith.constant 0 : index
    %c0_12 = arith.constant 0 : index
    %29 = vector.load %arg5[%c0_11, %c0_12] : memref<128x64xf32, #tpu.memory_space<vmem>>, vector<128x64xf32>
    %cst_13 = arith.constant dense<0.000000e+00> : vector<128x64xf32>
    %30 = tpu.matmul %28, %29, %cst_13 {dimension_numbers = #tpu.dot_dimension_numbers<[1], [0], [0], [1], [0, 0, 1, 1], [], []>} : vector<128x128xf32>, vector<128x64xf32>, vector<128x64xf32> -> vector<128x64xf32>
    %c0_14 = arith.constant 0 : index
    %c0_15 = arith.constant 0 : index
    %31 = vector.load %arg6[%c0_14, %c0_15] : memref<1x64xf32, #tpu.memory_space<vmem>>, vector<1x64xf32>
    %32 = vector.broadcast %31 : vector<1x64xf32> to vector<128x64xf32>
    %33 = arith.addf %30, %32 : vector<128x64xf32>
    %34 = math.tanh %33 : vector<128x64xf32>
    %c0_16 = arith.constant 0 : index
    %c0_17 = arith.constant 0 : index
    %35 = vector.load %arg7[%c0_16, %c0_17] : memref<64x1xf32, #tpu.memory_space<vmem>>, vector<64x1xf32>
    %cst_18 = arith.constant dense<0.000000e+00> : vector<128x1xf32>
    %36 = tpu.matmul %34, %35, %cst_18 {dimension_numbers = #tpu.dot_dimension_numbers<[1], [0], [0], [1], [0, 0, 1, 1], [], []>} : vector<128x64xf32>, vector<64x1xf32>, vector<128x1xf32> -> vector<128x1xf32>
    %c0_19 = arith.constant 0 : index
    %c0_20 = arith.constant 0 : index
    %37 = memref.load %arg8[%c0_19, %c0_20] : memref<1x1xf32, #tpu.memory_space<smem>>
    %38 = vector.broadcast %37 : f32 to vector<128x1xf32>
    %39 = arith.addf %36, %38 : vector<128x1xf32>
    %cst_21 = arith.constant 0.000000e+00 : f32
    %40 = vector.broadcast %cst_21 : f32 to vector<128x1xf32>
    %41 = arith.cmpf ogt, %2, %40 : vector<128x1xf32>
    %cst_22 = arith.constant -1.000000e+09 : f32
    %42 = vector.broadcast %cst_22 : f32 to vector<128x1xf32>
    %43 = arith.select %41, %39, %42 : vector<128x1xi1>, vector<128x1xf32>
    %44 = vector.shape_cast %43 : vector<128x1xf32> to vector<16x8x1xf32>
    %cst_23 = arith.constant dense<0xFF800000> : vector<16x1xf32>
    %45 = vector.multi_reduction <maximumf>, %44, %cst_23 [1] : vector<16x8x1xf32> to vector<16x1xf32>
    %46 = vector.shape_cast %45 : vector<16x1xf32> to vector<16x1x1xf32>
    %47 = vector.broadcast %46 : vector<16x1x1xf32> to vector<16x8x1xf32>
    %48 = arith.subf %44, %47 : vector<16x8x1xf32>
    %49 = math.exp %48 : vector<16x8x1xf32>
    %cst_24 = arith.constant dense<0.000000e+00> : vector<16x1xf32>
    %50 = vector.multi_reduction <add>, %49, %cst_24 [1] : vector<16x8x1xf32> to vector<16x1xf32>
    %51 = vector.shape_cast %50 : vector<16x1xf32> to vector<16x1x1xf32>
    %52 = tpu.reciprocal %51 {approx = true} : vector<16x1x1xf32> -> vector<16x1x1xf32>
    %53 = vector.broadcast %52 : vector<16x1x1xf32> to vector<16x8x1xf32>
    %54 = arith.mulf %49, %53 : vector<16x8x1xf32>
    %55 = vector.shape_cast %28 : vector<128x128xf32> to vector<16x8x128xf32>
    %56 = vector.broadcast %54 : vector<16x8x1xf32> to vector<16x8x128xf32>
    %57 = arith.mulf %55, %56 : vector<16x8x128xf32>
    %cst_25 = arith.constant dense<0.000000e+00> : vector<16x128xf32>
    %58 = vector.multi_reduction <add>, %57, %cst_25 [1] : vector<16x8x128xf32> to vector<16x128xf32>
    %c0_26 = arith.constant 0 : index
    %c0_27 = arith.constant 0 : index
    %59 = vector.load %arg9[%c0_26, %c0_27] : memref<16x128xf32, #tpu.memory_space<vmem>>, vector<16x128xf32>
    tpu.vector_store %arg9[%c0_26, %c0_27], %58 {strides = array<i32>} : memref<16x128xf32, #tpu.memory_space<vmem>>, vector<16x128xf32>,
    return
  }
  func.func @transform_0(%arg0: i32) -> (i32, i32, i32) {
    %c0_i32 = arith.constant 0 : i32
    %c0_i32_0 = arith.constant 0 : i32
    %c0_i32_1 = arith.constant 0 : i32
    return %arg0, %c0_i32, %c0_i32_0 : i32, i32, i32
  }
  func.func @transform_1(%arg0: i32) -> (i32, i32) {
    %c0_i32 = arith.constant 0 : i32
    %c0_i32_0 = arith.constant 0 : i32
    return %arg0, %c0_i32 : i32, i32
  }
  func.func @transform_2(%arg0: i32) -> (i32, i32) {
    %c0_i32 = arith.constant 0 : i32
    %c0_i32_0 = arith.constant 0 : i32
    %c0_i32_1 = arith.constant 0 : i32
    return %c0_i32, %c0_i32_0 : i32, i32
  }
  func.func @transform_3(%arg0: i32) -> (i32, i32) {
    %c0_i32 = arith.constant 0 : i32
    %c0_i32_0 = arith.constant 0 : i32
    %c0_i32_1 = arith.constant 0 : i32
    return %c0_i32, %c0_i32_0 : i32, i32
  }
  func.func @transform_4(%arg0: i32) -> (i32, i32) {
    %c0_i32 = arith.constant 0 : i32
    %c0_i32_0 = arith.constant 0 : i32
    %c0_i32_1 = arith.constant 0 : i32
    return %c0_i32, %c0_i32_0 : i32, i32
  }
  func.func @transform_5(%arg0: i32) -> (i32, i32) {
    %c0_i32 = arith.constant 0 : i32
    %c0_i32_0 = arith.constant 0 : i32
    %c0_i32_1 = arith.constant 0 : i32
    return %c0_i32, %c0_i32_0 : i32, i32
  }
  func.func @transform_6(%arg0: i32) -> (i32, i32) {
    %c0_i32 = arith.constant 0 : i32
    %c0_i32_0 = arith.constant 0 : i32
    %c0_i32_1 = arith.constant 0 : i32
    return %c0_i32, %c0_i32_0 : i32, i32
  }
  func.func @transform_7(%arg0: i32) -> (i32, i32) {
    %c0_i32 = arith.constant 0 : i32
    %c0_i32_0 = arith.constant 0 : i32
    %c0_i32_1 = arith.constant 0 : i32
    return %c0_i32, %c0_i32_0 : i32, i32
  }
  func.func @transform_8(%arg0: i32) -> (i32, i32) {
    %c0_i32 = arith.constant 0 : i32
    %c0_i32_0 = arith.constant 0 : i32
    return %arg0, %c0_i32 : i32, i32
  }
}

</mosaic_0001>

<llo_original>
// kernel: cnn_sequence_embedding.1
$region0: #{cnn_sequence_embedding.1}
  #allocation0 [shape = 'u32[]', space=smem, size = 0x4, offset = 0x4, fixed_abs, tag = 'smem constant byte address 0x4 - core index']
  #allocation1 [shape = 'u32[144,128]{1,0:T(1,128)}', space=vmem, size = 0x12000, scoped, tag = 'internal scratch']
  #allocation2 [shape = 'f32[1,1]{1,0:T(1,128)S(6)}', space=smem, size = 0x200, scoped, tag = 'scoped memory for cnn_sequence_embedding.1']
  %s0 = inlined_call_operand.vmem [shape: f32[32,8,32], index: 0, kind: input, shape index: {}]
  %s1 = inlined_call_operand.vmem [shape: f32[256,1], index: 1, kind: input, shape index: {}]
  %s2 = inlined_call_operand.vmem [shape: f32[96,128], index: 2, kind: input, shape index: {}]
  %s3 = inlined_call_operand.vmem [shape: f32[1,128], index: 3, kind: input, shape index: {}]
  %s4 = inlined_call_operand.vmem [shape: f32[128,64], index: 4, kind: input, shape index: {}]
  %s5 = inlined_call_operand.vmem [shape: f32[1,64], index: 5, kind: input, shape index: {}]
  %s6 = inlined_call_operand.vmem [shape: f32[64,1], index: 6, kind: input, shape index: {}]
  %s7 = inlined_call_operand.<no memory space> [shape: f32[1,1], index: 7, kind: input, shape index: {}]
  %s8 = inlined_call_operand.hbm [shape: f32[32,128], index: 8, kind: output, shape index: {}]
  %s9 = sld [smem:[#allocation0]]
  $region65: #{cnn_sequence_embedding.1} parent=0
    _
  %s11 = ssub.s32 1, %s9
  %s12 = scalar_select 0, %s11, %s9
  %13 = sst [smem:[#allocation2]] %s7
  $region1: #{cnn_sequence_embedding.1} parent=0
    #allocation3 [shape = 'u8[16384]{0}', space=vmem, size = 0x4000, scoped, tag = 'output window, operand 0']
    #allocation4 [shape = 's32[2]{0}', space=sflag, size = 0x8, scoped, tag = 'scoped memory for cnn_sequence_embedding.1']
    %14 = vsyncpa [#allocation4], 0
    %s15 = scalar_lea.sflag [#allocation4], 1
    %16 = vsyncpa %s15, 0
    loop: start=0, step=1, limit=4
    $region2: #{cnn_sequence_embedding.1} parent=1 // loop_pre_header
      _
    $region3: #{cnn_sequence_embedding.1} parent=1 // loop_header
      %s18 = sphi 0, %s22
      %p19 = scmp.ge.s32.totalorder %s18, 4
      %s28 = sphi 0, %s30
      %s31 = sphi 0, %s28
      %s32 = sphi 0, %s31
      %s48 = sphi 0, %s32
      %s54 = sphi 0, %s56
      %s57 = sphi 0, %s54
      %s58 = sphi 0, %s57
      %s74 = sphi 0, %s58
      %s78 = sphi 0, %s78
      %s80 = sphi 0, %s78
      %s81 = sphi 0, %s80
      %s95 = sphi 0, %s81
      %s99 = sphi 0, %s99
      %s101 = sphi 0, %s99
      %s102 = sphi 0, %s101
      %s116 = sphi 0, %s102
      %s120 = sphi 0, %s120
      %s122 = sphi 0, %s120
      %s123 = sphi 0, %s122
      %s137 = sphi 0, %s123
      %s141 = sphi 0, %s141
      %s143 = sphi 0, %s141
      %s144 = sphi 0, %s143
      %s158 = sphi 0, %s144
      %s162 = sphi 0, %s162
      %s164 = sphi 0, %s162
      %s165 = sphi 0, %s164
      %s179 = sphi 0, %s165
      %s183 = sphi 0, %s183
      %s185 = sphi 0, %s183
      %s186 = sphi 0, %s185
      %s200 = sphi 0, %s186
      %s206 = sphi 0, %s208
      %s209 = sphi 0, %s206
      %s210 = sphi 0, %s209
      %s226 = sphi 0, %s210
    $region4: #{cnn_sequence_embedding.1} parent=1 // loop_header_branch
      %21 = sbr.rel (%p19) target = $region8
    $region5: #{cnn_sequence_embedding.1} parent=1 // loop_body
      %s23 = ssub.s32 %s18, 1
      %s24 = ssub.s32 %s18, 2
      %s25 = sadd.s32 %s18, 1
      %s26 = ssub.s32 %s18, %s25
      %p27 = scmp.eq.s32.totalorder %s26, 0
      %s29 = sadd.s32 %s28, 1
      %s30 = scalar_select %p27, %s28, %s29
      %p33 = pneg %p27
      %p34 = scmp.eq.s32.totalorder %s18, 1
      %p35 = por %p33, %p34
      %p36 = scmp.ne.s32.totalorder %s28, %s31
      %p37 = scmp.eq.s32.totalorder %s18, 0
      %p38 = por %p36, %p37
      %p39 = scmp.ne.s32.totalorder %s28, %s31
      %p40 = scmp.eq.s32.totalorder %s23, 1
      %p41 = por %p39, %p40
      %p42 = scmp.ne.s32.totalorder %s31, %s32
      %p43 = scmp.eq.s32.totalorder %s23, 0
      %p44 = por %p42, %p43
      %p45 = scmp.ne.s32.totalorder %s31, %s32
      %p46 = scmp.eq.s32.totalorder %s24, 1
      %p47 = por %p45, %p46
      %p49 = scmp.ne.s32.totalorder %s32, %s48
      %p50 = scmp.eq.s32.totalorder %s24, 0
      %p51 = por %p49, %p50
      %s52 = ssub.s32 %s18, %s25
      %p53 = scmp.eq.s32.totalorder %s52, 0
      %s55 = sadd.s32 %s54, 1
      %s56 = scalar_select %p53, %s54, %s55
      %p59 = pneg %p53
      %p60 = scmp.eq.s32.totalorder %s18, 1
      %p61 = por %p59, %p60
      %p62 = scmp.ne.s32.totalorder %s54, %s57
      %p63 = scmp.eq.s32.totalorder %s18, 0
      %p64 = por %p62, %p63
      %p65 = scmp.ne.s32.totalorder %s54, %s57
      %p66 = scmp.eq.s32.totalorder %s23, 1
      %p67 = por %p65, %p66
      %p68 = scmp.ne.s32.totalorder %s57, %s58
      %p69 = scmp.eq.s32.totalorder %s23, 0
      %p70 = por %p68, %p69
      %p71 = scmp.ne.s32.totalorder %s57, %s58
      %p72 = scmp.eq.s32.totalorder %s24, 1
      %p73 = por %p71, %p72
      %p75 = scmp.ne.s32.totalorder %s58, %s74
      %p76 = scmp.eq.s32.totalorder %s24, 0
      %p77 = por %p75, %p76
      %s79 = sadd.s32 %s78, 1
      %p82 = scmp.eq.s32.totalorder %s18, 1
      %p83 = scmp.ne.s32.totalorder %s78, %s80
      %p84 = scmp.eq.s32.totalorder %s18, 0
      %p85 = por %p83, %p84
      %p86 = scmp.ne.s32.totalorder %s78, %s80
      %p87 = scmp.eq.s32.totalorder %s23, 1
      %p88 = por %p86, %p87
      %p89 = scmp.ne.s32.totalorder %s80, %s81
      %p90 = scmp.eq.s32.totalorder %s23, 0
      %p91 = por %p89, %p90
      %p92 = scmp.ne.s32.totalorder %s80, %s81
      %p93 = scmp.eq.s32.totalorder %s24, 1
      %p94 = por %p92, %p93
      %p96 = scmp.ne.s32.totalorder %s81, %s95
      %p97 = scmp.eq.s32.totalorder %s24, 0
      %p98 = por %p96, %p97
      %s100 = sadd.s32 %s99, 1
      %p103 = scmp.eq.s32.totalorder %s18, 1
      %p104 = scmp.ne.s32.totalorder %s99, %s101
      %p105 = scmp.eq.s32.totalorder %s18, 0
      %p106 = por %p104, %p105
      %p107 = scmp.ne.s32.totalorder %s99, %s101
      %p108 = scmp.eq.s32.totalorder %s23, 1
      %p109 = por %p107, %p108
      %p110 = scmp.ne.s32.totalorder %s101, %s102
      %p111 = scmp.eq.s32.totalorder %s23, 0
      %p112 = por %p110, %p111
      %p113 = scmp.ne.s32.totalorder %s101, %s102
      %p114 = scmp.eq.s32.totalorder %s24, 1
      %p115 = por %p113, %p114
      %p117 = scmp.ne.s32.totalorder %s102, %s116
      %p118 = scmp.eq.s32.totalorder %s24, 0
      %p119 = por %p117, %p118
      %s121 = sadd.s32 %s120, 1
      %p124 = scmp.eq.s32.totalorder %s18, 1
      %p125 = scmp.ne.s32.totalorder %s120, %s122
      %p126 = scmp.eq.s32.totalorder %s18, 0
      %p127 = por %p125, %p126
      %p128 = scmp.ne.s32.totalorder %s120, %s122
      %p129 = scmp.eq.s32.totalorder %s23, 1
      %p130 = por %p128, %p129
      %p131 = scmp.ne.s32.totalorder %s122, %s123
      %p132 = scmp.eq.s32.totalorder %s23, 0
      %p133 = por %p131, %p132
      %p134 = scmp.ne.s32.totalorder %s122, %s123
      %p135 = scmp.eq.s32.totalorder %s24, 1
      %p136 = por %p134, %p135
      %p138 = scmp.ne.s32.totalorder %s123, %s137
      %p139 = scmp.eq.s32.totalorder %s24, 0
      %p140 = por %p138, %p139
      %s142 = sadd.s32 %s141, 1
      %p145 = scmp.eq.s32.totalorder %s18, 1
      %p146 = scmp.ne.s32.totalorder %s141, %s143
      %p147 = scmp.eq.s32.totalorder %s18, 0
      %p148 = por %p146, %p147
      %p149 = scmp.ne.s32.totalorder %s141, %s143
      %p150 = scmp.eq.s32.totalorder %s23, 1
      %p151 = por %p149, %p150
      %p152 = scmp.ne.s32.totalorder %s143, %s144
      %p153 = scmp.eq.s32.totalorder %s23, 0
      %p154 = por %p152, %p153
      %p155 = scmp.ne.s32.totalorder %s143, %s144
      %p156 = scmp.eq.s32.totalorder %s24, 1
      %p157 = por %p155, %p156
      %p159 = scmp.ne.s32.totalorder %s144, %s158
      %p160 = scmp.eq.s32.totalorder %s24, 0
      %p161 = por %p159, %p160
      %s163 = sadd.s32 %s162, 1
      %p166 = scmp.eq.s32.totalorder %s18, 1
      %p167 = scmp.ne.s32.totalorder %s162, %s164
      %p168 = scmp.eq.s32.totalorder %s18, 0
      %p169 = por %p167, %p168
      %p170 = scmp.ne.s32.totalorder %s162, %s164
      %p171 = scmp.eq.s32.totalorder %s23, 1
      %p172 = por %p170, %p171
      %p173 = scmp.ne.s32.totalorder %s164, %s165
      %p174 = scmp.eq.s32.totalorder %s23, 0
      %p175 = por %p173, %p174
      %p176 = scmp.ne.s32.totalorder %s164, %s165
      %p177 = scmp.eq.s32.totalorder %s24, 1
      %p178 = por %p176, %p177
      %p180 = scmp.ne.s32.totalorder %s165, %s179
      %p181 = scmp.eq.s32.totalorder %s24, 0
      %p182 = por %p180, %p181
      %s184 = sadd.s32 %s183, 1
      %p187 = scmp.eq.s32.totalorder %s18, 1
      %p188 = scmp.ne.s32.totalorder %s183, %s185
      %p189 = scmp.eq.s32.totalorder %s18, 0
      %p190 = por %p188, %p189
      %p191 = scmp.ne.s32.totalorder %s183, %s185
      %p192 = scmp.eq.s32.totalorder %s23, 1
      %p193 = por %p191, %p192
      %p194 = scmp.ne.s32.totalorder %s185, %s186
      %p195 = scmp.eq.s32.totalorder %s23, 0
      %p196 = por %p194, %p195
      %p197 = scmp.ne.s32.totalorder %s185, %s186
      %p198 = scmp.eq.s32.totalorder %s24, 1
      %p199 = por %p197, %p198
      %p201 = scmp.ne.s32.totalorder %s186, %s200
      %p202 = scmp.eq.s32.totalorder %s24, 0
      %p203 = por %p201, %p202
      %s204 = ssub.s32 %s18, %s25
      %p205 = scmp.eq.s32.totalorder %s204, 0
      %s207 = sadd.s32 %s206, 1
      %s208 = scalar_select %p205, %s206, %s207
      %p211 = pneg %p205
      %p212 = scmp.eq.s32.totalorder %s18, 1
      %p213 = por %p211, %p212
      %p214 = scmp.ne.s32.totalorder %s206, %s209
      %p215 = scmp.eq.s32.totalorder %s18, 0
      %p216 = por %p214, %p215
      %p217 = scmp.ne.s32.totalorder %s206, %s209
      %p218 = scmp.eq.s32.totalorder %s23, 1
      %p219 = por %p217, %p218
      %p220 = scmp.ne.s32.totalorder %s209, %s210
      %p221 = scmp.eq.s32.totalorder %s23, 0
      %p222 = por %p220, %p221
      %p223 = scmp.ne.s32.totalorder %s209, %s210
      %p224 = scmp.eq.s32.totalorder %s24, 1
      %p225 = por %p223, %p224
      %p227 = scmp.ne.s32.totalorder %s210, %s226
      %p228 = scmp.eq.s32.totalorder %s24, 0
      %p229 = por %p227, %p228
      %p230 = scmp.le.s32.totalorder 1, %s18
      %p231 = scmp.lt.s32.totalorder %s18, 3
      %p232 = pnand %p230, %p231
      %p233 = pneg %p232
      // Predicated region
      $region9: #{cnn_sequence_embedding.1} parent=5 // pred_check
        _
      $region10: #{cnn_sequence_embedding.1} parent=5 // pred_check_branch
        %235 = sbr.rel (%p232) target = $region12
      $region11: #{cnn_sequence_embedding.1} parent=5 // pred_region
        %s236 = ssub.s32 %s18, 1
        // Predicated region
        $region13: #{cnn_sequence_embedding.1} parent=11 // pred_check
          %p237 = pneg %p91
        $region14: #{cnn_sequence_embedding.1} parent=11 // pred_check_branch
          %239 = sbr.rel (%p237) target = $region16
        $region15: #{cnn_sequence_embedding.1} parent=11 // pred_region
          _
        $region16: #{cnn_sequence_embedding.1} parent=11 // pred_fallthru
          _
        // Predicated region
        $region17: #{cnn_sequence_embedding.1} parent=11 // pred_check
          %p240 = pneg %p112
        $region18: #{cnn_sequence_embedding.1} parent=11 // pred_check_branch
          %242 = sbr.rel (%p240) target = $region20
        $region19: #{cnn_sequence_embedding.1} parent=11 // pred_region
          _
        $region20: #{cnn_sequence_embedding.1} parent=11 // pred_fallthru
          _
        // Predicated region
        $region21: #{cnn_sequence_embedding.1} parent=11 // pred_check
          %p243 = pneg %p133
        $region22: #{cnn_sequence_embedding.1} parent=11 // pred_check_branch
          %245 = sbr.rel (%p243) target = $region24
        $region23: #{cnn_sequence_embedding.1} parent=11 // pred_region
          _
        $region24: #{cnn_sequence_embedding.1} parent=11 // pred_fallthru
          _
        // Predicated region
        $region25: #{cnn_sequence_embedding.1} parent=11 // pred_check
          %p246 = pneg %p154
        $region26: #{cnn_sequence_embedding.1} parent=11 // pred_check_branch
          %248 = sbr.rel (%p246) target = $region28
        $region27: #{cnn_sequence_embedding.1} parent=11 // pred_region
          _
        $region28: #{cnn_sequence_embedding.1} parent=11 // pred_fallthru
          _
        // Predicated region
        $region29: #{cnn_sequence_embedding.1} parent=11 // pred_check
          %p249 = pneg %p175
        $region30: #{cnn_sequence_embedding.1} parent=11 // pred_check_branch
          %251 = sbr.rel (%p249) target = $region32
        $region31: #{cnn_sequence_embedding.1} parent=11 // pred_region
          _
        $region32: #{cnn_sequence_embedding.1} parent=11 // pred_fallthru
          _
        // Predicated region
        $region33: #{cnn_sequence_embedding.1} parent=11 // pred_check
          %p252 = pneg %p196
        $region34: #{cnn_sequence_embedding.1} parent=11 // pred_check_branch
          %254 = sbr.rel (%p252) target = $region36
        $region35: #{cnn_sequence_embedding.1} parent=11 // pred_region
          _
        $region36: #{cnn_sequence_embedding.1} parent=11 // pred_fallthru
          _
      $region12: #{cnn_sequence_embedding.1} parent=5 // pred_fallthru
        _
      %p255 = scmp.lt.s32.totalorder %s18, 2
      // Predicated region
      $region37: #{cnn_sequence_embedding.1} parent=5 // pred_check
        %p256 = pneg %p255
      $region38: #{cnn_sequence_embedding.1} parent=5 // pred_check_branch
        %258 = sbr.rel (%p256) target = $region40
      $region39: #{cnn_sequence_embedding.1} parent=5 // pred_region
        // Predicated region
        $region41: #{cnn_sequence_embedding.1} parent=39 // pred_check
          %p259 = pneg %p38
        $region42: #{cnn_sequence_embedding.1} parent=39 // pred_check_branch
          %261 = sbr.rel (%p259) target = $region44
        $region43: #{cnn_sequence_embedding.1} parent=39 // pred_region
          %s262 = smul.u32 16, %s18
          %p263 = scmp.lt.s32.totalorder %s262, 31
          %s264 = scalar_select %p263, %s262, 31
          %s265 = smul.addr %s264, 8
          %s266 = scalar_lea.vmem %s0, %s265
          %s267 = smul.u32 16, %s18
        $region44: #{cnn_sequence_embedding.1} parent=39 // pred_fallthru
          _
        // Predicated region
        $region45: #{cnn_sequence_embedding.1} parent=39 // pred_check
          %p268 = pneg %p64
        $region46: #{cnn_sequence_embedding.1} parent=39 // pred_check_branch
          %270 = sbr.rel (%p268) target = $region48
        $region47: #{cnn_sequence_embedding.1} parent=39 // pred_region
          %s271 = smul.u32 16, %s18
          %p272 = scmp.lt.s32.totalorder %s271, 31
          %s273 = scalar_select %p272, %s271, 31
          %s274 = smul.addr %s273, 8
          %s275 = scalar_lea.vmem %s1, %s274
          %s276 = smul.u32 16, %s18
        $region48: #{cnn_sequence_embedding.1} parent=39 // pred_fallthru
          _
      $region40: #{cnn_sequence_embedding.1} parent=5 // pred_fallthru
        _
      %p277 = scmp.le.s32.totalorder 1, %s18
      %p278 = scmp.lt.s32.totalorder %s18, 3
      %p279 = pnand %p277, %p278
      %p280 = pneg %p279
      // Predicated region
      $region49: #{cnn_sequence_embedding.1} parent=5 // pred_check
        _
      $region50: #{cnn_sequence_embedding.1} parent=5 // pred_check_branch
        %282 = sbr.rel (%p279) target = $region52
      $region51: #{cnn_sequence_embedding.1} parent=5 // pred_region
        %s283 = ssub.s32 %s18, 1
        %s284 = smul.u32 16, %s23
        %p285 = scmp.lt.s32.totalorder %s284, 31
        %s286 = scalar_select %p285, %s284, 31
        %s287 = smul.addr %s286, 8
        %s288 = scalar_lea.vmem %s0, %s287
        %p289 = pneg %p44
        %p290 = pneg %p41
        %s291 = smul.u32 16, %s23
        %p292 = scmp.lt.s32.totalorder %s291, 31
        %s293 = scalar_select %p292, %s291, 31
        %s294 = smul.addr %s293, 8
        %s295 = scalar_lea.vmem %s1, %s294
        %p296 = pneg %p70
        %p297 = pneg %p67
        %p298 = pneg %p91
        %p299 = pneg %p88
        %p300 = pneg %p112
        %p301 = pneg %p109
        %p302 = pneg %p133
        %p303 = pneg %p130
        %p304 = pneg %p154
        %p305 = pneg %p151
        %p306 = pneg %p175
        %p307 = pneg %p172
        %p308 = pneg %p196
        %p309 = pneg %p193
        %p310 = pneg %p222
        %p311 = pneg %p219
        %s312 = sand.u32 %s209, 1
        %s313 = scalar_lea.sflag [#allocation4], %s312
        %s314 = sand.u32 %s209, 1
        %s315 = smul.addr %s314, 16
        %s316 = scalar_lea.vmem [#allocation3], %s315
        %s317 = smul.u32 16, %s23
        %p318 = scmp.lt.s32.totalorder %s317, 31
        %s319 = scalar_select %p318, %s317, 31
        %s320 = smul.addr %s319, 8
        %s321 = scalar_lea.vmem %s0, %s320
        %s322 = smul.u32 16, %s23
        %s323 = smul.u32 16, %s23
        %p324 = scmp.lt.s32.totalorder %s323, 31
        %s325 = scalar_select %p324, %s323, 31
        %s326 = smul.addr %s325, 8
        %s327 = scalar_lea.vmem %s1, %s326
        %s328 = smul.u32 16, %s23
        %s329 = smul.u32 2, %s23
        %v330 = vld [vmem:[%s321] sm:$0xff]
        %v331 = vld [vmem:[%s321 + $0x8] sm:$0xff]
        %v332 = vld [vmem:[%s321 + $0x10] sm:$0xff]
        %v333 = vld [vmem:[%s321 + $0x18] sm:$0xff]
        %v334 = vld [vmem:[%s321 + $0x20] sm:$0xff]
        %v335 = vld [vmem:[%s321 + $0x28] sm:$0xff]
        %v336 = vld [vmem:[%s321 + $0x30] sm:$0xff]
        %v337 = vld [vmem:[%s321 + $0x38] sm:$0xff]
        %v338 = vld [vmem:[%s321 + $0x40] sm:$0xff]
        %v339 = vld [vmem:[%s321 + $0x48] sm:$0xff]
        %v340 = vld [vmem:[%s321 + $0x50] sm:$0xff]
        %v341 = vld [vmem:[%s321 + $0x58] sm:$0xff]
        %v342 = vld [vmem:[%s321 + $0x60] sm:$0xff]
        %v343 = vld [vmem:[%s321 + $0x68] sm:$0xff]
        %v344 = vld [vmem:[%s321 + $0x70] sm:$0xff]
        %v345 = vld [vmem:[%s321 + $0x78] sm:$0xff]
        %v346 = vld [vmem:[%s327] sm:$0xff]
        %v347 = vld [vmem:[%s327 + $0x8] sm:$0xff]
        %v348 = vld [vmem:[%s327 + $0x10] sm:$0xff]
        %v349 = vld [vmem:[%s327 + $0x18] sm:$0xff]
        %v350 = vld [vmem:[%s327 + $0x20] sm:$0xff]
        %v351 = vld [vmem:[%s327 + $0x28] sm:$0xff]
        %v352 = vld [vmem:[%s327 + $0x30] sm:$0xff]
        %v353 = vld [vmem:[%s327 + $0x38] sm:$0xff]
        %v354 = vld [vmem:[%s327 + $0x40] sm:$0xff]
        %v355 = vld [vmem:[%s327 + $0x48] sm:$0xff]
        %v356 = vld [vmem:[%s327 + $0x50] sm:$0xff]
        %v357 = vld [vmem:[%s327 + $0x58] sm:$0xff]
        %v358 = vld [vmem:[%s327 + $0x60] sm:$0xff]
        %v359 = vld [vmem:[%s327 + $0x68] sm:$0xff]
        %v360 = vld [vmem:[%s327 + $0x70] sm:$0xff]
        %v361 = vld [vmem:[%s327 + $0x78] sm:$0xff]
        %v362 = vlaneseq
        %v363 = vshrl.u32 %v362, 7
        %vm364 = vcmp.eq.s32.totalorder %v363, 0
        %v365 = vrot.slane %v330, 7
        %v366 = vrot.slane %v331, 7
        %v367 = vrot.slane %v332, 7
        %v368 = vrot.slane %v333, 7
        %v369 = vrot.slane %v334, 7
        %v370 = vrot.slane %v335, 7
        %v371 = vrot.slane %v336, 7
        %v372 = vrot.slane %v337, 7
        %v373 = vrot.slane %v338, 7
        %v374 = vrot.slane %v339, 7
        %v375 = vrot.slane %v340, 7
        %v376 = vrot.slane %v341, 7
        %v377 = vrot.slane %v342, 7
        %v378 = vrot.slane %v343, 7
        %v379 = vrot.slane %v344, 7
        %v380 = vrot.slane %v345, 7
        %vm381 = vcmp.lt.s32.totalorder %v363, 1
        %v382 = vsel %vm381, %v379, %v380
        %v383 = vsel %vm381, %v378, %v379
        %v384 = vsel %vm381, %v377, %v378
        %v385 = vsel %vm381, %v376, %v377
        %v386 = vsel %vm381, %v375, %v376
        %v387 = vsel %vm381, %v374, %v375
        %v388 = vsel %vm381, %v373, %v374
        %v389 = vsel %vm381, %v372, %v373
        %v390 = vsel %vm381, %v371, %v372
        %v391 = vsel %vm381, %v370, %v371
        %v392 = vsel %vm381, %v369, %v370
        %v393 = vsel %vm381, %v368, %v369
        %v394 = vsel %vm381, %v367, %v368
        %v395 = vsel %vm381, %v366, %v367
        %v396 = vsel %vm381, %v365, %v366
        %v397 = vsel %vm381, %v380, %v365
        %v398 = vsel %vm364, 1, 0
        %vm399 = vcmp.eq.s32.totalorder %v398, 1
        %v400 = vsel %vm399, 0.0, %v397
        %v401 = vsel %vm399, 0.0, %v396
        %v402 = vsel %vm399, 0.0, %v395
        %v403 = vsel %vm399, 0.0, %v394
        %v404 = vsel %vm399, 0.0, %v393
        %v405 = vsel %vm399, 0.0, %v392
        %v406 = vsel %vm399, 0.0, %v391
        %v407 = vsel %vm399, 0.0, %v390
        %v408 = vsel %vm399, 0.0, %v389
        %v409 = vsel %vm399, 0.0, %v388
        %v410 = vsel %vm399, 0.0, %v387
        %v411 = vsel %vm399, 0.0, %v386
        %v412 = vsel %vm399, 0.0, %v385
        %v413 = vsel %vm399, 0.0, %v384
        %v414 = vsel %vm399, 0.0, %v383
        %v415 = vsel %vm399, 0.0, %v382
        %vm416 = vcmp.eq.s32.totalorder %v363, 7
        %v417 = vrot.slane %v330, 1
        %v418 = vrot.slane %v331, 1
        %v419 = vrot.slane %v332, 1
        %v420 = vrot.slane %v333, 1
        %v421 = vrot.slane %v334, 1
        %v422 = vrot.slane %v335, 1
        %v423 = vrot.slane %v336, 1
        %v424 = vrot.slane %v337, 1
        %v425 = vrot.slane %v338, 1
        %v426 = vrot.slane %v339, 1
        %v427 = vrot.slane %v340, 1
        %v428 = vrot.slane %v341, 1
        %v429 = vrot.slane %v342, 1
        %v430 = vrot.slane %v343, 1
        %v431 = vrot.slane %v344, 1
        %v432 = vrot.slane %v345, 1
        %vm433 = vcmp.lt.s32.totalorder %v363, 7
        %v434 = vsel %vm433, %v431, %v432
        %v435 = vsel %vm433, %v430, %v431
        %v436 = vsel %vm433, %v429, %v430
        %v437 = vsel %vm433, %v428, %v429
        %v438 = vsel %vm433, %v427, %v428
        %v439 = vsel %vm433, %v426, %v427
        %v440 = vsel %vm433, %v425, %v426
        %v441 = vsel %vm433, %v424, %v425
        %v442 = vsel %vm433, %v423, %v424
        %v443 = vsel %vm433, %v422, %v423
        %v444 = vsel %vm433, %v421, %v422
        %v445 = vsel %vm433, %v420, %v421
        %v446 = vsel %vm433, %v419, %v420
        %v447 = vsel %vm433, %v418, %v419
        %v448 = vsel %vm433, %v417, %v418
        %v449 = vsel %vm433, %v432, %v417
        %v450 = vsel %vm416, 1, 0
        %vm451 = vcmp.eq.s32.totalorder %v450, 1
        %v452 = vsel %vm451, 0.0, %v448
        %v453 = vsel %vm451, 0.0, %v447
        %v454 = vsel %vm451, 0.0, %v446
        %v455 = vsel %vm451, 0.0, %v445
        %v456 = vsel %vm451, 0.0, %v444
        %v457 = vsel %vm451, 0.0, %v443
        %v458 = vsel %vm451, 0.0, %v442
        %v459 = vsel %vm451, 0.0, %v441
        %v460 = vsel %vm451, 0.0, %v440
        %v461 = vsel %vm451, 0.0, %v439
        %v462 = vsel %vm451, 0.0, %v438
        %v463 = vsel %vm451, 0.0, %v437
        %v464 = vsel %vm451, 0.0, %v436
        %v465 = vsel %vm451, 0.0, %v435
        %v466 = vsel %vm451, 0.0, %v434
        %v467 = vsel %vm451, 0.0, %v449
        %484 = vrot.lane.b32.xlu0 %v330, 32
        %v485 = vpop.permute.xlu0 %484
        %486 = vrot.lane.b32.xlu0 %v331, 32
        %v487 = vpop.permute.xlu0 %486
        %488 = vrot.lane.b32.xlu0 %v332, 32
        %v489 = vpop.permute.xlu0 %488
        %490 = vrot.lane.b32.xlu0 %v333, 32
        %v491 = vpop.permute.xlu0 %490
        %492 = vrot.lane.b32.xlu0 %v334, 32
        %v493 = vpop.permute.xlu0 %492
        %494 = vrot.lane.b32.xlu0 %v335, 32
        %v495 = vpop.permute.xlu0 %494
        %496 = vrot.lane.b32.xlu0 %v336, 32
        %v497 = vpop.permute.xlu0 %496
        %498 = vrot.lane.b32.xlu0 %v337, 32
        %v499 = vpop.permute.xlu0 %498
        %500 = vrot.lane.b32.xlu0 %v338, 32
        %v501 = vpop.permute.xlu0 %500
        %502 = vrot.lane.b32.xlu0 %v339, 32
        %v503 = vpop.permute.xlu0 %502
        %504 = vrot.lane.b32.xlu0 %v340, 32
        %v505 = vpop.permute.xlu0 %504
        %506 = vrot.lane.b32.xlu0 %v341, 32
        %v507 = vpop.permute.xlu0 %506
        %508 = vrot.lane.b32.xlu0 %v342, 32
        %v509 = vpop.permute.xlu0 %508
        %510 = vrot.lane.b32.xlu0 %v343, 32
        %v511 = vpop.permute.xlu0 %510
        %512 = vrot.lane.b32.xlu0 %v344, 32
        %v513 = vpop.permute.xlu0 %512
        %514 = vrot.lane.b32.xlu0 %v345, 32
        %v515 = vpop.permute.xlu0 %514
        %548 = vrot.lane.b32.xlu0 %v452, 64
        %v549 = vpop.permute.xlu0 %548
        %550 = vrot.lane.b32.xlu0 %v453, 64
        %v551 = vpop.permute.xlu0 %550
        %552 = vrot.lane.b32.xlu0 %v454, 64
        %v553 = vpop.permute.xlu0 %552
        %554 = vrot.lane.b32.xlu0 %v455, 64
        %v555 = vpop.permute.xlu0 %554
        %556 = vrot.lane.b32.xlu0 %v456, 64
        %v557 = vpop.permute.xlu0 %556
        %558 = vrot.lane.b32.xlu0 %v457, 64
        %v559 = vpop.permute.xlu0 %558
        %560 = vrot.lane.b32.xlu0 %v458, 64
        %v561 = vpop.permute.xlu0 %560
        %562 = vrot.lane.b32.xlu0 %v459, 64
        %v563 = vpop.permute.xlu0 %562
        %564 = vrot.lane.b32.xlu0 %v460, 64
        %v565 = vpop.permute.xlu0 %564
        %566 = vrot.lane.b32.xlu0 %v461, 64
        %v567 = vpop.permute.xlu0 %566
        %568 = vrot.lane.b32.xlu0 %v462, 64
        %v569 = vpop.permute.xlu0 %568
        %570 = vrot.lane.b32.xlu0 %v463, 64
        %v571 = vpop.permute.xlu0 %570
        %572 = vrot.lane.b32.xlu0 %v464, 64
        %v573 = vpop.permute.xlu0 %572
        %574 = vrot.lane.b32.xlu0 %v465, 64
        %v575 = vpop.permute.xlu0 %574
        %576 = vrot.lane.b32.xlu0 %v466, 64
        %v577 = vpop.permute.xlu0 %576
        %578 = vrot.lane.b32.xlu0 %v467, 64
        %v579 = vpop.permute.xlu0 %578
        %vm596 = vcmask 261120
        %v597 = vsel %vm596, %v400, %v485
        %v598 = vsel %vm596, %v401, %v487
        %v599 = vsel %vm596, %v402, %v489
        %v600 = vsel %vm596, %v403, %v491
        %v601 = vsel %vm596, %v404, %v493
        %v602 = vsel %vm596, %v405, %v495
        %v603 = vsel %vm596, %v406, %v497
        %v604 = vsel %vm596, %v407, %v499
        %v605 = vsel %vm596, %v408, %v501
        %v606 = vsel %vm596, %v409, %v503
        %v607 = vsel %vm596, %v410, %v505
        %v608 = vsel %vm596, %v411, %v507
        %v609 = vsel %vm596, %v412, %v509
        %v610 = vsel %vm596, %v413, %v511
        %v611 = vsel %vm596, %v414, %v513
        %v612 = vsel %vm596, %v415, %v515
        %vm613 = vcmask 523264
        %v614 = vsel %vm613, %v597, %v549
        %v615 = vsel %vm613, %v598, %v551
        %v616 = vsel %vm613, %v599, %v553
        %v617 = vsel %vm613, %v600, %v555
        %v618 = vsel %vm613, %v601, %v557
        %v619 = vsel %vm613, %v602, %v559
        %v620 = vsel %vm613, %v603, %v561
        %v621 = vsel %vm613, %v604, %v563
        %v622 = vsel %vm613, %v605, %v565
        %v623 = vsel %vm613, %v606, %v567
        %v624 = vsel %vm613, %v607, %v569
        %v625 = vsel %vm613, %v608, %v571
        %v626 = vsel %vm613, %v609, %v573
        %v627 = vsel %vm613, %v610, %v575
        %v628 = vsel %vm613, %v611, %v577
        %v629 = vsel %vm613, %v612, %v579
        %v630 = vld [vmem:[%s2] sm:$0xff]
        %v631 = vld [vmem:[%s2 + $0x8] sm:$0xff]
        %v632 = vld [vmem:[%s2 + $0x10] sm:$0xff]
        %v633 = vld [vmem:[%s2 + $0x18] sm:$0xff]
        %v634 = vld [vmem:[%s2 + $0x20] sm:$0xff]
        %v635 = vld [vmem:[%s2 + $0x28] sm:$0xff]
        %v636 = vld [vmem:[%s2 + $0x30] sm:$0xff]
        %v637 = vld [vmem:[%s2 + $0x38] sm:$0xff]
        %v638 = vld [vmem:[%s2 + $0x40] sm:$0xff]
        %v639 = vld [vmem:[%s2 + $0x48] sm:$0xff]
        %v640 = vld [vmem:[%s2 + $0x50] sm:$0xff]
        %v641 = vld [vmem:[%s2 + $0x58] sm:$0xff]
        %v642 = vld [vmem:[%s3] sm:$0x1]
        %v644 = vlaneseq
        %v645 = vshrl.u32 %v644, 7
        %v646 = vsub.s32 0, %v645
        %v647 = vrot.slane %v642, %v646
        %vm649 = vcmask 785408
        %v651 = vsel %vm649, %v614, 0
        %v654 = vsel %vm649, %v615, 0
        %v657 = vsel %vm649, %v616, 0
        %v660 = vsel %vm649, %v617, 0
        %v663 = vsel %vm649, %v618, 0
        %v666 = vsel %vm649, %v619, 0
        %v669 = vsel %vm649, %v620, 0
        %v672 = vsel %vm649, %v621, 0
        %v675 = vsel %vm649, %v622, 0
        %v678 = vsel %vm649, %v623, 0
        %v681 = vsel %vm649, %v624, 0
        %v684 = vsel %vm649, %v625, 0
        %v687 = vsel %vm649, %v626, 0
        %v690 = vsel %vm649, %v627, 0
        %v693 = vsel %vm649, %v628, 0
        %v696 = vsel %vm649, %v629, 0
        %698 = vmatprep.subr.mxu0 0.0
        %699 = vmatpush1.msra.mxu0 0.0
        %700 = vmatprep.subr.mxu0 0.0
        %701 = vmatpush1.msra.mxu0 0.0
        %702 = vmatprep.subr.mxu0 0.0
        %703 = vmatpush1.msra.mxu0 0.0
        %704 = vmatprep.subr.mxu0 0.0
        %705 = vmatpush1.msra.mxu0 0.0
        %706 = vmatprep.subr.mxu0 0.0
        %707 = vmatpush1.msra.mxu0 %v641
        %708 = vmatprep.subr.mxu0 0.0
        %709 = vmatpush1.msra.mxu0 %v640
        %710 = vmatprep.subr.mxu0 0.0
        %711 = vmatpush1.msra.mxu0 %v639
        %712 = vmatprep.subr.mxu0 0.0
        %713 = vmatpush1.msra.mxu0 %v638
        %714 = vmatprep.subr.mxu0 0.0
        %715 = vmatpush1.msra.mxu0 %v637
        %716 = vmatprep.subr.mxu0 0.0
        %717 = vmatpush1.msra.mxu0 %v636
        %718 = vmatprep.subr.mxu0 0.0
        %719 = vmatpush1.msra.mxu0 %v635
        %720 = vmatprep.subr.mxu0 0.0
        %721 = vmatpush1.msra.mxu0 %v634
        %722 = vmatprep.subr.mxu0 0.0
        %723 = vmatpush1.msra.mxu0 %v633
        %724 = vmatprep.subr.mxu0 0.0
        %725 = vmatpush1.msra.mxu0 %v632
        %726 = vmatprep.subr.mxu0 0.0
        %727 = vmatpush1.msra.mxu0 %v631
        %728 = vmatprep.subr.mxu0 0.0
        %729 = vmatpush1.msra.mxu0 %v630
        %730 = vmatprep.subr.mxu0 0.0
        %731 = vmatpush2.msra.mxu0 0.0
        %732 = vmatprep.subr.mxu0 0.0
        %733 = vmatpush2.msra.mxu0 0.0
        %734 = vmatprep.subr.mxu0 0.0
        %735 = vmatpush2.msra.mxu0 0.0
        %736 = vmatprep.subr.mxu0 0.0
        %737 = vmatpush2.msra.mxu0 0.0
        %738 = vmatprep.subr.mxu0 0.0
        %739 = vmatpush2.msra.mxu0 0.0
        %740 = vmatprep.subr.mxu0 0.0
        %741 = vmatpush2.msra.mxu0 0.0
        %742 = vmatprep.subr.mxu0 0.0
        %743 = vmatpush2.msra.mxu0 0.0
        %744 = vmatprep.subr.mxu0 0.0
        %745 = vmatpush2.msra.mxu0 0.0
        %746 = vmatprep.subr.mxu0 0.0
        %747 = vmatpush2.msra.mxu0 0.0
        %748 = vmatprep.subr.mxu0 0.0
        %749 = vmatpush2.msra.mxu0 0.0
        %750 = vmatprep.subr.mxu0 0.0
        %751 = vmatpush2.msra.mxu0 0.0
        %752 = vmatprep.subr.mxu0 0.0
        %753 = vmatpush2.msra.mxu0 0.0
        %754 = vmatprep.subr.mxu0 0.0
        %755 = vmatpush2.msra.mxu0 0.0
        %756 = vmatprep.subr.mxu0 0.0
        %757 = vmatpush2.msra.mxu0 0.0
        %758 = vmatprep.subr.mxu0 0.0
        %759 = vmatpush2.msra.mxu0 0.0
        %760 = vmatprep.subr.mxu0 0.0
        %761 = vmatpush2.msra.mxu0 0.0
        %762 = vmatprep.mubr.f32.mxu0 0.0
        %763 = vmatmul.mubr.f32.gmra.mxu0 %v651
        %v764 = vpop.f32.mrf.mxu0
        %v765 = vadd.f32 %v647, %v764
        %v766 = vpop.f32.mrf.mxu0
        %767 = vmatprep.mubr.f32.mxu0 0.0
        %768 = vmatmul.mubr.f32.gmra.mxu0 %v654
        %v769 = vpop.f32.mrf.mxu0
        %v770 = vadd.f32 %v647, %v769
        %v771 = vpop.f32.mrf.mxu0
        %772 = vmatprep.mubr.f32.mxu0 0.0
        %773 = vmatmul.mubr.f32.gmra.mxu0 %v657
        %v774 = vpop.f32.mrf.mxu0
        %v775 = vadd.f32 %v647, %v774
        %v776 = vpop.f32.mrf.mxu0
        %777 = vmatprep.mubr.f32.mxu0 0.0
        %778 = vmatmul.mubr.f32.gmra.mxu0 %v660
        %v779 = vpop.f32.mrf.mxu0
        %v780 = vadd.f32 %v647, %v779
        %v781 = vpop.f32.mrf.mxu0
        %782 = vmatprep.mubr.f32.mxu0 0.0
        %783 = vmatmul.mubr.f32.gmra.mxu0 %v663
        %v784 = vpop.f32.mrf.mxu0
        %v785 = vadd.f32 %v647, %v784
        %v786 = vpop.f32.mrf.mxu0
        %787 = vmatprep.mubr.f32.mxu0 0.0
        %788 = vmatmul.mubr.f32.gmra.mxu0 %v666
        %v789 = vpop.f32.mrf.mxu0
        %v790 = vadd.f32 %v647, %v789
        %v791 = vpop.f32.mrf.mxu0
        %792 = vmatprep.mubr.f32.mxu0 0.0
        %793 = vmatmul.mubr.f32.gmra.mxu0 %v669
        %v794 = vpop.f32.mrf.mxu0
        %v795 = vadd.f32 %v647, %v794
        %v796 = vpop.f32.mrf.mxu0
        %797 = vmatprep.mubr.f32.mxu0 0.0
        %798 = vmatmul.mubr.f32.gmra.mxu0 %v672
        %v799 = vpop.f32.mrf.mxu0
        %v800 = vadd.f32 %v647, %v799
        %v801 = vpop.f32.mrf.mxu0
        %802 = vmatprep.mubr.f32.mxu0 0.0
        %803 = vmatmul.mubr.f32.gmra.mxu0 %v675
        %v804 = vpop.f32.mrf.mxu0
        %v805 = vadd.f32 %v647, %v804
        %v806 = vpop.f32.mrf.mxu0
        %807 = vmatprep.mubr.f32.mxu0 0.0
        %808 = vmatmul.mubr.f32.gmra.mxu0 %v678
        %v809 = vpop.f32.mrf.mxu0
        %v810 = vadd.f32 %v647, %v809
        %v811 = vpop.f32.mrf.mxu0
        %812 = vmatprep.mubr.f32.mxu0 0.0
        %813 = vmatmul.mubr.f32.gmra.mxu0 %v681
        %v814 = vpop.f32.mrf.mxu0
        %v815 = vadd.f32 %v647, %v814
        %v816 = vpop.f32.mrf.mxu0
        %817 = vmatprep.mubr.f32.mxu0 0.0
        %818 = vmatmul.mubr.f32.gmra.mxu0 %v684
        %v819 = vpop.f32.mrf.mxu0
        %v820 = vadd.f32 %v647, %v819
        %v821 = vpop.f32.mrf.mxu0
        %822 = vmatprep.mubr.f32.mxu0 0.0
        %823 = vmatmul.mubr.f32.gmra.mxu0 %v687
        %v824 = vpop.f32.mrf.mxu0
        %v825 = vadd.f32 %v647, %v824
        %v826 = vpop.f32.mrf.mxu0
        %827 = vmatprep.mubr.f32.mxu0 0.0
        %828 = vmatmul.mubr.f32.gmra.mxu0 %v690
        %v829 = vpop.f32.mrf.mxu0
        %v830 = vadd.f32 %v647, %v829
        %v831 = vpop.f32.mrf.mxu0
        %832 = vmatprep.mubr.f32.mxu0 0.0
        %833 = vmatmul.mubr.f32.gmra.mxu0 %v693
        %v834 = vpop.f32.mrf.mxu0
        %v835 = vadd.f32 %v647, %v834
        %v836 = vpop.f32.mrf.mxu0
        %837 = vmatprep.mubr.f32.mxu0 0.0
        %838 = vmatmul.mubr.f32.gmra.mxu0 %v696
        %v839 = vpop.f32.mrf.mxu0
        %v840 = vadd.f32 %v647, %v839
        %v841 = vpop.f32.mrf.mxu0
        %842 = vdwg.mxu0
        %v843 = vmax.f32 %v765, 0.0
        %v844 = vmax.f32 %v770, 0.0
        %v845 = vmax.f32 %v775, 0.0
        %v846 = vmax.f32 %v780, 0.0
        %v847 = vmax.f32 %v785, 0.0
        %v848 = vmax.f32 %v790, 0.0
        %v849 = vmax.f32 %v795, 0.0
        %v850 = vmax.f32 %v800, 0.0
        %v851 = vmax.f32 %v805, 0.0
        %v852 = vmax.f32 %v810, 0.0
        %v853 = vmax.f32 %v815, 0.0
        %v854 = vmax.f32 %v820, 0.0
        %v855 = vmax.f32 %v825, 0.0
        %v856 = vmax.f32 %v830, 0.0
        %v857 = vmax.f32 %v835, 0.0
        %v858 = vmax.f32 %v840, 0.0
        %860 = vset.pattern.permute.xlu0 0
        %861 = vperm.xlu0 %860, %v346
        %v862 = vpop.permute.xlu0 %861
        %865 = vset.pattern.permute.xlu0 0
        %866 = vperm.xlu0 %865, %v347
        %v867 = vpop.permute.xlu0 %866
        %870 = vset.pattern.permute.xlu0 0
        %871 = vperm.xlu0 %870, %v348
        %v872 = vpop.permute.xlu0 %871
        %875 = vset.pattern.permute.xlu0 0
        %876 = vperm.xlu0 %875, %v349
        %v877 = vpop.permute.xlu0 %876
        %880 = vset.pattern.permute.xlu0 0
        %881 = vperm.xlu0 %880, %v350
        %v882 = vpop.permute.xlu0 %881
        %885 = vset.pattern.permute.xlu0 0
        %886 = vperm.xlu0 %885, %v351
        %v887 = vpop.permute.xlu0 %886
        %890 = vset.pattern.permute.xlu0 0
        %891 = vperm.xlu0 %890, %v352
        %v892 = vpop.permute.xlu0 %891
        %895 = vset.pattern.permute.xlu0 0
        %896 = vperm.xlu0 %895, %v353
        %v897 = vpop.permute.xlu0 %896
        %900 = vset.pattern.permute.xlu0 0
        %901 = vperm.xlu0 %900, %v354
        %v902 = vpop.permute.xlu0 %901
        %905 = vset.pattern.permute.xlu0 0
        %906 = vperm.xlu0 %905, %v355
        %v907 = vpop.permute.xlu0 %906
        %910 = vset.pattern.permute.xlu0 0
        %911 = vperm.xlu0 %910, %v356
        %v912 = vpop.permute.xlu0 %911
        %915 = vset.pattern.permute.xlu0 0
        %916 = vperm.xlu0 %915, %v357
        %v917 = vpop.permute.xlu0 %916
        %920 = vset.pattern.permute.xlu0 0
        %921 = vperm.xlu0 %920, %v358
        %v922 = vpop.permute.xlu0 %921
        %925 = vset.pattern.permute.xlu0 0
        %926 = vperm.xlu0 %925, %v359
        %v927 = vpop.permute.xlu0 %926
        %930 = vset.pattern.permute.xlu0 0
        %931 = vperm.xlu0 %930, %v360
        %v932 = vpop.permute.xlu0 %931
        %935 = vset.pattern.permute.xlu0 0
        %936 = vperm.xlu0 %935, %v361
        %v937 = vpop.permute.xlu0 %936
        %v939 = vmul.f32 %v843, %v862
        %v940 = vmul.f32 %v844, %v867
        %v941 = vmul.f32 %v845, %v872
        %v942 = vmul.f32 %v846, %v877
        %v943 = vmul.f32 %v847, %v882
        %v944 = vmul.f32 %v848, %v887
        %v945 = vmul.f32 %v849, %v892
        %v946 = vmul.f32 %v850, %v897
        %v947 = vmul.f32 %v851, %v902
        %v948 = vmul.f32 %v852, %v907
        %v949 = vmul.f32 %v853, %v912
        %v950 = vmul.f32 %v854, %v917
        %v951 = vmul.f32 %v855, %v922
        %v952 = vmul.f32 %v856, %v927
        %v953 = vmul.f32 %v857, %v932
        %v954 = vmul.f32 %v858, %v937
        %v955 = vld [vmem:[%s4] sm:$0xff]
        %v956 = vld [vmem:[%s4 + $0x8] sm:$0xff]
        %v957 = vld [vmem:[%s4 + $0x10] sm:$0xff]
        %v958 = vld [vmem:[%s4 + $0x18] sm:$0xff]
        %v959 = vld [vmem:[%s4 + $0x20] sm:$0xff]
        %v960 = vld [vmem:[%s4 + $0x28] sm:$0xff]
        %v961 = vld [vmem:[%s4 + $0x30] sm:$0xff]
        %v962 = vld [vmem:[%s4 + $0x38] sm:$0xff]
        %v963 = vld [vmem:[%s4 + $0x40] sm:$0xff]
        %v964 = vld [vmem:[%s4 + $0x48] sm:$0xff]
        %v965 = vld [vmem:[%s4 + $0x50] sm:$0xff]
        %v966 = vld [vmem:[%s4 + $0x58] sm:$0xff]
        %v967 = vld [vmem:[%s4 + $0x60] sm:$0xff]
        %v968 = vld [vmem:[%s4 + $0x68] sm:$0xff]
        %v969 = vld [vmem:[%s4 + $0x70] sm:$0xff]
        %v970 = vld [vmem:[%s4 + $0x78] sm:$0xff]
        %v971 = vld [vmem:[%s5] sm:$0x1]
        %v973 = vlaneseq
        %v974 = vshrl.u32 %v973, 7
        %v975 = vsub.s32 0, %v974
        %v976 = vrot.slane %v971, %v975
        %978 = vmatprep.subr.mxu0 0.0
        %979 = vmatpush1.msra.mxu0 %v970
        %980 = vmatprep.subr.mxu0 0.0
        %981 = vmatpush1.msra.mxu0 %v969
        %982 = vmatprep.subr.mxu0 0.0
        %983 = vmatpush1.msra.mxu0 %v968
        %984 = vmatprep.subr.mxu0 0.0
        %985 = vmatpush1.msra.mxu0 %v967
        %986 = vmatprep.subr.mxu0 0.0
        %987 = vmatpush1.msra.mxu0 %v966
        %988 = vmatprep.subr.mxu0 0.0
        %989 = vmatpush1.msra.mxu0 %v965
        %990 = vmatprep.subr.mxu0 0.0
        %991 = vmatpush1.msra.mxu0 %v964
        %992 = vmatprep.subr.mxu0 0.0
        %993 = vmatpush1.msra.mxu0 %v963
        %994 = vmatprep.subr.mxu0 0.0
        %995 = vmatpush1.msra.mxu0 %v962
        %996 = vmatprep.subr.mxu0 0.0
        %997 = vmatpush1.msra.mxu0 %v961
        %998 = vmatprep.subr.mxu0 0.0
        %999 = vmatpush1.msra.mxu0 %v960
        %1000 = vmatprep.subr.mxu0 0.0
        %1001 = vmatpush1.msra.mxu0 %v959
        %1002 = vmatprep.subr.mxu0 0.0
        %1003 = vmatpush1.msra.mxu0 %v958
        %1004 = vmatprep.subr.mxu0 0.0
        %1005 = vmatpush1.msra.mxu0 %v957
        %1006 = vmatprep.subr.mxu0 0.0
        %1007 = vmatpush1.msra.mxu0 %v956
        %1008 = vmatprep.subr.mxu0 0.0
        %1009 = vmatpush1.msra.mxu0 %v955
        %1010 = vmatprep.subr.mxu0 0.0
        %1011 = vmatpush2.msra.mxu0 0.0
        %1012 = vmatprep.subr.mxu0 0.0
        %1013 = vmatpush2.msra.mxu0 0.0
        %1014 = vmatprep.subr.mxu0 0.0
        %1015 = vmatpush2.msra.mxu0 0.0
        %1016 = vmatprep.subr.mxu0 0.0
        %1017 = vmatpush2.msra.mxu0 0.0
        %1018 = vmatprep.subr.mxu0 0.0
        %1019 = vmatpush2.msra.mxu0 0.0
        %1020 = vmatprep.subr.mxu0 0.0
        %1021 = vmatpush2.msra.mxu0 0.0
        %1022 = vmatprep.subr.mxu0 0.0
        %1023 = vmatpush2.msra.mxu0 0.0
        %1024 = vmatprep.subr.mxu0 0.0
        %1025 = vmatpush2.msra.mxu0 0.0
        %1026 = vmatprep.subr.mxu0 0.0
        %1027 = vmatpush2.msra.mxu0 0.0
        %1028 = vmatprep.subr.mxu0 0.0
        %1029 = vmatpush2.msra.mxu0 0.0
        %1030 = vmatprep.subr.mxu0 0.0
        %1031 = vmatpush2.msra.mxu0 0.0
        %1032 = vmatprep.subr.mxu0 0.0
        %1033 = vmatpush2.msra.mxu0 0.0
        %1034 = vmatprep.subr.mxu0 0.0
        %1035 = vmatpush2.msra.mxu0 0.0
        %1036 = vmatprep.subr.mxu0 0.0
        %1037 = vmatpush2.msra.mxu0 0.0
        %1038 = vmatprep.subr.mxu0 0.0
        %1039 = vmatpush2.msra.mxu0 0.0
        %1040 = vmatprep.subr.mxu0 0.0
        %1041 = vmatpush2.msra.mxu0 0.0
        %1042 = vmatprep.mubr.f32.mxu0 0.0
        %1043 = vmatmul.mubr.f32.gmra.mxu0 %v939
        %v1044 = vpop.f32.mrf.mxu0
        %v1045 = vadd.f32 %v976, %v1044
        %v1046 = vpop.f32.mrf.mxu0
        %1047 = vmatprep.mubr.f32.mxu0 0.0
        %1048 = vmatmul.mubr.f32.gmra.mxu0 %v940
        %v1049 = vpop.f32.mrf.mxu0
        %v1050 = vadd.f32 %v976, %v1049
        %v1051 = vpop.f32.mrf.mxu0
        %1052 = vmatprep.mubr.f32.mxu0 0.0
        %1053 = vmatmul.mubr.f32.gmra.mxu0 %v941
        %v1054 = vpop.f32.mrf.mxu0
        %v1055 = vadd.f32 %v976, %v1054
        %v1056 = vpop.f32.mrf.mxu0
        %1057 = vmatprep.mubr.f32.mxu0 0.0
        %1058 = vmatmul.mubr.f32.gmra.mxu0 %v942
        %v1059 = vpop.f32.mrf.mxu0
        %v1060 = vadd.f32 %v976, %v1059
        %v1061 = vpop.f32.mrf.mxu0
        %1062 = vmatprep.mubr.f32.mxu0 0.0
        %1063 = vmatmul.mubr.f32.gmra.mxu0 %v943
        %v1064 = vpop.f32.mrf.mxu0
        %v1065 = vadd.f32 %v976, %v1064
        %v1066 = vpop.f32.mrf.mxu0
        %1067 = vmatprep.mubr.f32.mxu0 0.0
        %1068 = vmatmul.mubr.f32.gmra.mxu0 %v944
        %v1069 = vpop.f32.mrf.mxu0
        %v1070 = vadd.f32 %v976, %v1069
        %v1071 = vpop.f32.mrf.mxu0
        %1072 = vmatprep.mubr.f32.mxu0 0.0
        %1073 = vmatmul.mubr.f32.gmra.mxu0 %v945
        %v1074 = vpop.f32.mrf.mxu0
        %v1075 = vadd.f32 %v976, %v1074
        %v1076 = vpop.f32.mrf.mxu0
        %1077 = vmatprep.mubr.f32.mxu0 0.0
        %1078 = vmatmul.mubr.f32.gmra.mxu0 %v946
        %v1079 = vpop.f32.mrf.mxu0
        %v1080 = vadd.f32 %v976, %v1079
        %v1081 = vpop.f32.mrf.mxu0
        %1082 = vmatprep.mubr.f32.mxu0 0.0
        %1083 = vmatmul.mubr.f32.gmra.mxu0 %v947
        %v1084 = vpop.f32.mrf.mxu0
        %v1085 = vadd.f32 %v976, %v1084
        %v1086 = vpop.f32.mrf.mxu0
        %1087 = vmatprep.mubr.f32.mxu0 0.0
        %1088 = vmatmul.mubr.f32.gmra.mxu0 %v948
        %v1089 = vpop.f32.mrf.mxu0
        %v1090 = vadd.f32 %v976, %v1089
        %v1091 = vpop.f32.mrf.mxu0
        %1092 = vmatprep.mubr.f32.mxu0 0.0
        %1093 = vmatmul.mubr.f32.gmra.mxu0 %v949
        %v1094 = vpop.f32.mrf.mxu0
        %v1095 = vadd.f32 %v976, %v1094
        %v1096 = vpop.f32.mrf.mxu0
        %1097 = vmatprep.mubr.f32.mxu0 0.0
        %1098 = vmatmul.mubr.f32.gmra.mxu0 %v950
        %v1099 = vpop.f32.mrf.mxu0
        %v1100 = vadd.f32 %v976, %v1099
        %v1101 = vpop.f32.mrf.mxu0
        %1102 = vmatprep.mubr.f32.mxu0 0.0
        %1103 = vmatmul.mubr.f32.gmra.mxu0 %v951
        %v1104 = vpop.f32.mrf.mxu0
        %v1105 = vadd.f32 %v976, %v1104
        %v1106 = vpop.f32.mrf.mxu0
        %1107 = vmatprep.mubr.f32.mxu0 0.0
        %1108 = vmatmul.mubr.f32.gmra.mxu0 %v952
        %v1109 = vpop.f32.mrf.mxu0
        %v1110 = vadd.f32 %v976, %v1109
        %v1111 = vpop.f32.mrf.mxu0
        %1112 = vmatprep.mubr.f32.mxu0 0.0
        %1113 = vmatmul.mubr.f32.gmra.mxu0 %v953
        %v1114 = vpop.f32.mrf.mxu0
        %v1115 = vadd.f32 %v976, %v1114
        %v1116 = vpop.f32.mrf.mxu0
        %1117 = vmatprep.mubr.f32.mxu0 0.0
        %1118 = vmatmul.mubr.f32.gmra.mxu0 %v954
        %v1119 = vpop.f32.mrf.mxu0
        %v1120 = vadd.f32 %v976, %v1119
        %v1121 = vpop.f32.mrf.mxu0
        %1122 = vdwg.mxu0
        %v1123 = vtanh.pop %v1045
        %v1124 = vtanh.pop %v1050
        %v1125 = vtanh.pop %v1055
        %v1126 = vtanh.pop %v1060
        %v1127 = vtanh.pop %v1065
        %v1128 = vtanh.pop %v1070
        %v1129 = vtanh.pop %v1075
        %v1130 = vtanh.pop %v1080
        %v1131 = vtanh.pop %v1085
        %v1132 = vtanh.pop %v1090
        %v1133 = vtanh.pop %v1095
        %v1134 = vtanh.pop %v1100
        %v1135 = vtanh.pop %v1105
        %v1136 = vtanh.pop %v1110
        %v1137 = vtanh.pop %v1115
        %v1138 = vtanh.pop %v1120
        %v1139 = vld [vmem:[%s6] sm:$0xff]
        %v1140 = vld [vmem:[%s6 + $0x8] sm:$0xff]
        %v1141 = vld [vmem:[%s6 + $0x10] sm:$0xff]
        %v1142 = vld [vmem:[%s6 + $0x18] sm:$0xff]
        %v1143 = vld [vmem:[%s6 + $0x20] sm:$0xff]
        %v1144 = vld [vmem:[%s6 + $0x28] sm:$0xff]
        %v1145 = vld [vmem:[%s6 + $0x30] sm:$0xff]
        %v1146 = vld [vmem:[%s6 + $0x38] sm:$0xff]
        %s1147 = sld [smem:[#allocation2]]
        %v1148 = vstv %s1147
        %v1150 = vsel %vm613, %v1123, 0
        %v1153 = vsel %vm613, %v1124, 0
        %v1156 = vsel %vm613, %v1125, 0
        %v1159 = vsel %vm613, %v1126, 0
        %v1162 = vsel %vm613, %v1127, 0
        %v1165 = vsel %vm613, %v1128, 0
        %v1168 = vsel %vm613, %v1129, 0
        %v1171 = vsel %vm613, %v1130, 0
        %v1174 = vsel %vm613, %v1131, 0
        %v1177 = vsel %vm613, %v1132, 0
        %v1180 = vsel %vm613, %v1133, 0
        %v1183 = vsel %vm613, %v1134, 0
        %v1186 = vsel %vm613, %v1135, 0
        %v1189 = vsel %vm613, %v1136, 0
        %v1192 = vsel %vm613, %v1137, 0
        %v1195 = vsel %vm613, %v1138, 0
        %1197 = vmatprep.subr.mxu0 0.0
        %1198 = vmatpush1.msra.mxu0 0.0
        %1199 = vmatprep.subr.mxu0 0.0
        %1200 = vmatpush1.msra.mxu0 0.0
        %1201 = vmatprep.subr.mxu0 0.0
        %1202 = vmatpush1.msra.mxu0 0.0
        %1203 = vmatprep.subr.mxu0 0.0
        %1204 = vmatpush1.msra.mxu0 0.0
        %1205 = vmatprep.subr.mxu0 0.0
        %1206 = vmatpush1.msra.mxu0 0.0
        %1207 = vmatprep.subr.mxu0 0.0
        %1208 = vmatpush1.msra.mxu0 0.0
        %1209 = vmatprep.subr.mxu0 0.0
        %1210 = vmatpush1.msra.mxu0 0.0
        %1211 = vmatprep.subr.mxu0 0.0
        %1212 = vmatpush1.msra.mxu0 0.0
        %1213 = vmatprep.subr.mxu0 0.0
        %1214 = vmatpush1.msra.mxu0 %v1146
        %1215 = vmatprep.subr.mxu0 0.0
        %1216 = vmatpush1.msra.mxu0 %v1145
        %1217 = vmatprep.subr.mxu0 0.0
        %1218 = vmatpush1.msra.mxu0 %v1144
        %1219 = vmatprep.subr.mxu0 0.0
        %1220 = vmatpush1.msra.mxu0 %v1143
        %1221 = vmatprep.subr.mxu0 0.0
        %1222 = vmatpush1.msra.mxu0 %v1142
        %1223 = vmatprep.subr.mxu0 0.0
        %1224 = vmatpush1.msra.mxu0 %v1141
        %1225 = vmatprep.subr.mxu0 0.0
        %1226 = vmatpush1.msra.mxu0 %v1140
        %1227 = vmatprep.subr.mxu0 0.0
        %1228 = vmatpush1.msra.mxu0 %v1139
        %1229 = vmatprep.subr.mxu0 0.0
        %1230 = vmatpush2.msra.mxu0 0.0
        %1231 = vmatprep.subr.mxu0 0.0
        %1232 = vmatpush2.msra.mxu0 0.0
        %1233 = vmatprep.subr.mxu0 0.0
        %1234 = vmatpush2.msra.mxu0 0.0
        %1235 = vmatprep.subr.mxu0 0.0
        %1236 = vmatpush2.msra.mxu0 0.0
        %1237 = vmatprep.subr.mxu0 0.0
        %1238 = vmatpush2.msra.mxu0 0.0
        %1239 = vmatprep.subr.mxu0 0.0
        %1240 = vmatpush2.msra.mxu0 0.0
        %1241 = vmatprep.subr.mxu0 0.0
        %1242 = vmatpush2.msra.mxu0 0.0
        %1243 = vmatprep.subr.mxu0 0.0
        %1244 = vmatpush2.msra.mxu0 0.0
        %1245 = vmatprep.subr.mxu0 0.0
        %1246 = vmatpush2.msra.mxu0 0.0
        %1247 = vmatprep.subr.mxu0 0.0
        %1248 = vmatpush2.msra.mxu0 0.0
        %1249 = vmatprep.subr.mxu0 0.0
        %1250 = vmatpush2.msra.mxu0 0.0
        %1251 = vmatprep.subr.mxu0 0.0
        %1252 = vmatpush2.msra.mxu0 0.0
        %1253 = vmatprep.subr.mxu0 0.0
        %1254 = vmatpush2.msra.mxu0 0.0
        %1255 = vmatprep.subr.mxu0 0.0
        %1256 = vmatpush2.msra.mxu0 0.0
        %1257 = vmatprep.subr.mxu0 0.0
        %1258 = vmatpush2.msra.mxu0 0.0
        %1259 = vmatprep.subr.mxu0 0.0
        %1260 = vmatpush2.msra.mxu0 0.0
        %1261 = vmatprep.mubr.f32.mxu0 0.0
        %1262 = vmatmul.mubr.f32.gmra.mxu0 %v1150
        %v1263 = vpop.f32.mrf.mxu0
        %v1264 = vadd.f32 %v1148, %v1263
        %v1265 = vpop.f32.mrf.mxu0
        %1266 = vmatprep.mubr.f32.mxu0 0.0
        %1267 = vmatmul.mubr.f32.gmra.mxu0 %v1153
        %v1268 = vpop.f32.mrf.mxu0
        %v1269 = vadd.f32 %v1148, %v1268
        %v1270 = vpop.f32.mrf.mxu0
        %1271 = vmatprep.mubr.f32.mxu0 0.0
        %1272 = vmatmul.mubr.f32.gmra.mxu0 %v1156
        %v1273 = vpop.f32.mrf.mxu0
        %v1274 = vadd.f32 %v1148, %v1273
        %v1275 = vpop.f32.mrf.mxu0
        %1276 = vmatprep.mubr.f32.mxu0 0.0
        %1277 = vmatmul.mubr.f32.gmra.mxu0 %v1159
        %v1278 = vpop.f32.mrf.mxu0
        %v1279 = vadd.f32 %v1148, %v1278
        %v1280 = vpop.f32.mrf.mxu0
        %1281 = vmatprep.mubr.f32.mxu0 0.0
        %1282 = vmatmul.mubr.f32.gmra.mxu0 %v1162
        %v1283 = vpop.f32.mrf.mxu0
        %v1284 = vadd.f32 %v1148, %v1283
        %v1285 = vpop.f32.mrf.mxu0
        %1286 = vmatprep.mubr.f32.mxu0 0.0
        %1287 = vmatmul.mubr.f32.gmra.mxu0 %v1165
        %v1288 = vpop.f32.mrf.mxu0
        %v1289 = vadd.f32 %v1148, %v1288
        %v1290 = vpop.f32.mrf.mxu0
        %1291 = vmatprep.mubr.f32.mxu0 0.0
        %1292 = vmatmul.mubr.f32.gmra.mxu0 %v1168
        %v1293 = vpop.f32.mrf.mxu0
        %v1294 = vadd.f32 %v1148, %v1293
        %v1295 = vpop.f32.mrf.mxu0
        %1296 = vmatprep.mubr.f32.mxu0 0.0
        %1297 = vmatmul.mubr.f32.gmra.mxu0 %v1171
        %v1298 = vpop.f32.mrf.mxu0
        %v1299 = vadd.f32 %v1148, %v1298
        %v1300 = vpop.f32.mrf.mxu0
        %1301 = vmatprep.mubr.f32.mxu0 0.0
        %1302 = vmatmul.mubr.f32.gmra.mxu0 %v1174
        %v1303 = vpop.f32.mrf.mxu0
        %v1304 = vadd.f32 %v1148, %v1303
        %v1305 = vpop.f32.mrf.mxu0
        %1306 = vmatprep.mubr.f32.mxu0 0.0
        %1307 = vmatmul.mubr.f32.gmra.mxu0 %v1177
        %v1308 = vpop.f32.mrf.mxu0
        %v1309 = vadd.f32 %v1148, %v1308
        %v1310 = vpop.f32.mrf.mxu0
        %1311 = vmatprep.mubr.f32.mxu0 0.0
        %1312 = vmatmul.mubr.f32.gmra.mxu0 %v1180
        %v1313 = vpop.f32.mrf.mxu0
        %v1314 = vadd.f32 %v1148, %v1313
        %v1315 = vpop.f32.mrf.mxu0
        %1316 = vmatprep.mubr.f32.mxu0 0.0
        %1317 = vmatmul.mubr.f32.gmra.mxu0 %v1183
        %v1318 = vpop.f32.mrf.mxu0
        %v1319 = vadd.f32 %v1148, %v1318
        %v1320 = vpop.f32.mrf.mxu0
        %1321 = vmatprep.mubr.f32.mxu0 0.0
        %1322 = vmatmul.mubr.f32.gmra.mxu0 %v1186
        %v1323 = vpop.f32.mrf.mxu0
        %v1324 = vadd.f32 %v1148, %v1323
        %v1325 = vpop.f32.mrf.mxu0
        %1326 = vmatprep.mubr.f32.mxu0 0.0
        %1327 = vmatmul.mubr.f32.gmra.mxu0 %v1189
        %v1328 = vpop.f32.mrf.mxu0
        %v1329 = vadd.f32 %v1148, %v1328
        %v1330 = vpop.f32.mrf.mxu0
        %1331 = vmatprep.mubr.f32.mxu0 0.0
        %1332 = vmatmul.mubr.f32.gmra.mxu0 %v1192
        %v1333 = vpop.f32.mrf.mxu0
        %v1334 = vadd.f32 %v1148, %v1333
        %v1335 = vpop.f32.mrf.mxu0
        %1336 = vmatprep.mubr.f32.mxu0 0.0
        %1337 = vmatmul.mubr.f32.gmra.mxu0 %v1195
        %v1338 = vpop.f32.mrf.mxu0
        %v1339 = vadd.f32 %v1148, %v1338
        %v1340 = vpop.f32.mrf.mxu0
        %1341 = vdwg.mxu0
        %vm1342 = vcmp.gt.f32.partialorder %v346, 0.0
        %vm1343 = vcmp.gt.f32.partialorder %v347, 0.0
        %vm1344 = vcmp.gt.f32.partialorder %v348, 0.0
        %vm1345 = vcmp.gt.f32.partialorder %v349, 0.0
        %vm1346 = vcmp.gt.f32.partialorder %v350, 0.0
        %vm1347 = vcmp.gt.f32.partialorder %v351, 0.0
        %vm1348 = vcmp.gt.f32.partialorder %v352, 0.0
        %vm1349 = vcmp.gt.f32.partialorder %v353, 0.0
        %vm1350 = vcmp.gt.f32.partialorder %v354, 0.0
        %vm1351 = vcmp.gt.f32.partialorder %v355, 0.0
        %vm1352 = vcmp.gt.f32.partialorder %v356, 0.0
        %vm1353 = vcmp.gt.f32.partialorder %v357, 0.0
        %vm1354 = vcmp.gt.f32.partialorder %v358, 0.0
        %vm1355 = vcmp.gt.f32.partialorder %v359, 0.0
        %vm1356 = vcmp.gt.f32.partialorder %v360, 0.0
        %vm1357 = vcmp.gt.f32.partialorder %v361, 0.0
        %v1358 = vsel %vm1342, %v1264, -1e+09
        %v1359 = vsel %vm1343, %v1269, -1e+09
        %v1360 = vsel %vm1344, %v1274, -1e+09
        %v1361 = vsel %vm1345, %v1279, -1e+09
        %v1362 = vsel %vm1346, %v1284, -1e+09
        %v1363 = vsel %vm1347, %v1289, -1e+09
        %v1364 = vsel %vm1348, %v1294, -1e+09
        %v1365 = vsel %vm1349, %v1299, -1e+09
        %v1366 = vsel %vm1350, %v1304, -1e+09
        %v1367 = vsel %vm1351, %v1309, -1e+09
        %v1368 = vsel %vm1352, %v1314, -1e+09
        %v1369 = vsel %vm1353, %v1319, -1e+09
        %v1370 = vsel %vm1354, %v1324, -1e+09
        %v1371 = vsel %vm1355, %v1329, -1e+09
        %v1372 = vsel %vm1356, %v1334, -1e+09
        %v1373 = vsel %vm1357, %v1339, -1e+09
        %vm1374 = vcmask 7168
        %v1375 = vsel %vm1374, %v1358, -inf
        %v1376 = vrot.slane %v1375, 4
        %v1377 = vmax.f32 %v1375, %v1376
        %v1378 = vrot.slane %v1377, 2
        %v1379 = vmax.f32 %v1377, %v1378
        %v1380 = vrot.slane %v1379, 1
        %v1381 = vmax.f32 %v1379, %v1380
        %v1382 = vsel %vm1374, %v1359, -inf
        %v1383 = vrot.slane %v1382, 4
        %v1384 = vmax.f32 %v1382, %v1383
        %v1385 = vrot.slane %v1384, 2
        %v1386 = vmax.f32 %v1384, %v1385
        %v1387 = vrot.slane %v1386, 1
        %v1388 = vmax.f32 %v1386, %v1387
        %v1389 = vsel %vm1374, %v1360, -inf
        %v1390 = vrot.slane %v1389, 4
        %v1391 = vmax.f32 %v1389, %v1390
        %v1392 = vrot.slane %v1391, 2
        %v1393 = vmax.f32 %v1391, %v1392
        %v1394 = vrot.slane %v1393, 1
        %v1395 = vmax.f32 %v1393, %v1394
        %v1396 = vsel %vm1374, %v1361, -inf
        %v1397 = vrot.slane %v1396, 4
        %v1398 = vmax.f32 %v1396, %v1397
        %v1399 = vrot.slane %v1398, 2
        %v1400 = vmax.f32 %v1398, %v1399
        %v1401 = vrot.slane %v1400, 1
        %v1402 = vmax.f32 %v1400, %v1401
        %v1403 = vsel %vm1374, %v1362, -inf
        %v1404 = vrot.slane %v1403, 4
        %v1405 = vmax.f32 %v1403, %v1404
        %v1406 = vrot.slane %v1405, 2
        %v1407 = vmax.f32 %v1405, %v1406
        %v1408 = vrot.slane %v1407, 1
        %v1409 = vmax.f32 %v1407, %v1408
        %v1410 = vsel %vm1374, %v1363, -inf
        %v1411 = vrot.slane %v1410, 4
        %v1412 = vmax.f32 %v1410, %v1411
        %v1413 = vrot.slane %v1412, 2
        %v1414 = vmax.f32 %v1412, %v1413
        %v1415 = vrot.slane %v1414, 1
        %v1416 = vmax.f32 %v1414, %v1415
        %v1417 = vsel %vm1374, %v1364, -inf
        %v1418 = vrot.slane %v1417, 4
        %v1419 = vmax.f32 %v1417, %v1418
        %v1420 = vrot.slane %v1419, 2
        %v1421 = vmax.f32 %v1419, %v1420
        %v1422 = vrot.slane %v1421, 1
        %v1423 = vmax.f32 %v1421, %v1422
        %v1424 = vsel %vm1374, %v1365, -inf
        %v1425 = vrot.slane %v1424, 4
        %v1426 = vmax.f32 %v1424, %v1425
        %v1427 = vrot.slane %v1426, 2
        %v1428 = vmax.f32 %v1426, %v1427
        %v1429 = vrot.slane %v1428, 1
        %v1430 = vmax.f32 %v1428, %v1429
        %v1431 = vsel %vm1374, %v1366, -inf
        %v1432 = vrot.slane %v1431, 4
        %v1433 = vmax.f32 %v1431, %v1432
        %v1434 = vrot.slane %v1433, 2
        %v1435 = vmax.f32 %v1433, %v1434
        %v1436 = vrot.slane %v1435, 1
        %v1437 = vmax.f32 %v1435, %v1436
        %v1438 = vsel %vm1374, %v1367, -inf
        %v1439 = vrot.slane %v1438, 4
        %v1440 = vmax.f32 %v1438, %v1439
        %v1441 = vrot.slane %v1440, 2
        %v1442 = vmax.f32 %v1440, %v1441
        %v1443 = vrot.slane %v1442, 1
        %v1444 = vmax.f32 %v1442, %v1443
        %v1445 = vsel %vm1374, %v1368, -inf
        %v1446 = vrot.slane %v1445, 4
        %v1447 = vmax.f32 %v1445, %v1446
        %v1448 = vrot.slane %v1447, 2
        %v1449 = vmax.f32 %v1447, %v1448
        %v1450 = vrot.slane %v1449, 1
        %v1451 = vmax.f32 %v1449, %v1450
        %v1452 = vsel %vm1374, %v1369, -inf
        %v1453 = vrot.slane %v1452, 4
        %v1454 = vmax.f32 %v1452, %v1453
        %v1455 = vrot.slane %v1454, 2
        %v1456 = vmax.f32 %v1454, %v1455
        %v1457 = vrot.slane %v1456, 1
        %v1458 = vmax.f32 %v1456, %v1457
        %v1459 = vsel %vm1374, %v1370, -inf
        %v1460 = vrot.slane %v1459, 4
        %v1461 = vmax.f32 %v1459, %v1460
        %v1462 = vrot.slane %v1461, 2
        %v1463 = vmax.f32 %v1461, %v1462
        %v1464 = vrot.slane %v1463, 1
        %v1465 = vmax.f32 %v1463, %v1464
        %v1466 = vsel %vm1374, %v1371, -inf
        %v1467 = vrot.slane %v1466, 4
        %v1468 = vmax.f32 %v1466, %v1467
        %v1469 = vrot.slane %v1468, 2
        %v1470 = vmax.f32 %v1468, %v1469
        %v1471 = vrot.slane %v1470, 1
        %v1472 = vmax.f32 %v1470, %v1471
        %v1473 = vsel %vm1374, %v1372, -inf
        %v1474 = vrot.slane %v1473, 4
        %v1475 = vmax.f32 %v1473, %v1474
        %v1476 = vrot.slane %v1475, 2
        %v1477 = vmax.f32 %v1475, %v1476
        %v1478 = vrot.slane %v1477, 1
        %v1479 = vmax.f32 %v1477, %v1478
        %v1480 = vsel %vm1374, %v1373, -inf
        %v1481 = vrot.slane %v1480, 4
        %v1482 = vmax.f32 %v1480, %v1481
        %v1483 = vrot.slane %v1482, 2
        %v1484 = vmax.f32 %v1482, %v1483
        %v1485 = vrot.slane %v1484, 1
        %v1486 = vmax.f32 %v1484, %v1485
        %v1487 = vsub.f32 %v1358, %v1381
        %v1488 = vsub.f32 %v1359, %v1388
        %v1489 = vsub.f32 %v1360, %v1395
        %v1490 = vsub.f32 %v1361, %v1402
        %v1491 = vsub.f32 %v1362, %v1409
        %v1492 = vsub.f32 %v1363, %v1416
        %v1493 = vsub.f32 %v1364, %v1423
        %v1494 = vsub.f32 %v1365, %v1430
        %v1495 = vsub.f32 %v1366, %v1437
        %v1496 = vsub.f32 %v1367, %v1444
        %v1497 = vsub.f32 %v1368, %v1451
        %v1498 = vsub.f32 %v1369, %v1458
        %v1499 = vsub.f32 %v1370, %v1465
        %v1500 = vsub.f32 %v1371, %v1472
        %v1501 = vsub.f32 %v1372, %v1479
        %v1502 = vsub.f32 %v1373, %v1486
        %v1503 = vmul.f32 %v1487, 1.442695
        %v1504 = vpow.pop %v1503
        %v1505 = vmul.f32 %v1488, 1.442695
        %v1506 = vpow.pop %v1505
        %v1507 = vmul.f32 %v1489, 1.442695
        %v1508 = vpow.pop %v1507
        %v1509 = vmul.f32 %v1490, 1.442695
        %v1510 = vpow.pop %v1509
        %v1511 = vmul.f32 %v1491, 1.442695
        %v1512 = vpow.pop %v1511
        %v1513 = vmul.f32 %v1492, 1.442695
        %v1514 = vpow.pop %v1513
        %v1515 = vmul.f32 %v1493, 1.442695
        %v1516 = vpow.pop %v1515
        %v1517 = vmul.f32 %v1494, 1.442695
        %v1518 = vpow.pop %v1517
        %v1519 = vmul.f32 %v1495, 1.442695
        %v1520 = vpow.pop %v1519
        %v1521 = vmul.f32 %v1496, 1.442695
        %v1522 = vpow.pop %v1521
        %v1523 = vmul.f32 %v1497, 1.442695
        %v1524 = vpow.pop %v1523
        %v1525 = vmul.f32 %v1498, 1.442695
        %v1526 = vpow.pop %v1525
        %v1527 = vmul.f32 %v1499, 1.442695
        %v1528 = vpow.pop %v1527
        %v1529 = vmul.f32 %v1500, 1.442695
        %v1530 = vpow.pop %v1529
        %v1531 = vmul.f32 %v1501, 1.442695
        %v1532 = vpow.pop %v1531
        %v1533 = vmul.f32 %v1502, 1.442695
        %v1534 = vpow.pop %v1533
        %v1535 = vsel %vm1374, %v1504, 0.0
        %v1536 = vrot.slane %v1535, 4
        %v1537 = vadd.f32 %v1535, %v1536
        %v1538 = vrot.slane %v1537, 2
        %v1539 = vadd.f32 %v1537, %v1538
        %v1540 = vrot.slane %v1539, 1
        %v1541 = vadd.f32 %v1539, %v1540
        %v1542 = vsel %vm1374, %v1506, 0.0
        %v1543 = vrot.slane %v1542, 4
        %v1544 = vadd.f32 %v1542, %v1543
        %v1545 = vrot.slane %v1544, 2
        %v1546 = vadd.f32 %v1544, %v1545
        %v1547 = vrot.slane %v1546, 1
        %v1548 = vadd.f32 %v1546, %v1547
        %v1549 = vsel %vm1374, %v1508, 0.0
        %v1550 = vrot.slane %v1549, 4
        %v1551 = vadd.f32 %v1549, %v1550
        %v1552 = vrot.slane %v1551, 2
        %v1553 = vadd.f32 %v1551, %v1552
        %v1554 = vrot.slane %v1553, 1
        %v1555 = vadd.f32 %v1553, %v1554
        %v1556 = vsel %vm1374, %v1510, 0.0
        %v1557 = vrot.slane %v1556, 4
        %v1558 = vadd.f32 %v1556, %v1557
        %v1559 = vrot.slane %v1558, 2
        %v1560 = vadd.f32 %v1558, %v1559
        %v1561 = vrot.slane %v1560, 1
        %v1562 = vadd.f32 %v1560, %v1561
        %v1563 = vsel %vm1374, %v1512, 0.0
        %v1564 = vrot.slane %v1563, 4
        %v1565 = vadd.f32 %v1563, %v1564
        %v1566 = vrot.slane %v1565, 2
        %v1567 = vadd.f32 %v1565, %v1566
        %v1568 = vrot.slane %v1567, 1
        %v1569 = vadd.f32 %v1567, %v1568
        %v1570 = vsel %vm1374, %v1514, 0.0
        %v1571 = vrot.slane %v1570, 4
        %v1572 = vadd.f32 %v1570, %v1571
        %v1573 = vrot.slane %v1572, 2
        %v1574 = vadd.f32 %v1572, %v1573
        %v1575 = vrot.slane %v1574, 1
        %v1576 = vadd.f32 %v1574, %v1575
        %v1577 = vsel %vm1374, %v1516, 0.0
        %v1578 = vrot.slane %v1577, 4
        %v1579 = vadd.f32 %v1577, %v1578
        %v1580 = vrot.slane %v1579, 2
        %v1581 = vadd.f32 %v1579, %v1580
        %v1582 = vrot.slane %v1581, 1
        %v1583 = vadd.f32 %v1581, %v1582
        %v1584 = vsel %vm1374, %v1518, 0.0
        %v1585 = vrot.slane %v1584, 4
        %v1586 = vadd.f32 %v1584, %v1585
        %v1587 = vrot.slane %v1586, 2
        %v1588 = vadd.f32 %v1586, %v1587
        %v1589 = vrot.slane %v1588, 1
        %v1590 = vadd.f32 %v1588, %v1589
        %v1591 = vsel %vm1374, %v1520, 0.0
        %v1592 = vrot.slane %v1591, 4
        %v1593 = vadd.f32 %v1591, %v1592
        %v1594 = vrot.slane %v1593, 2
        %v1595 = vadd.f32 %v1593, %v1594
        %v1596 = vrot.slane %v1595, 1
        %v1597 = vadd.f32 %v1595, %v1596
        %v1598 = vsel %vm1374, %v1522, 0.0
        %v1599 = vrot.slane %v1598, 4
        %v1600 = vadd.f32 %v1598, %v1599
        %v1601 = vrot.slane %v1600, 2
        %v1602 = vadd.f32 %v1600, %v1601
        %v1603 = vrot.slane %v1602, 1
        %v1604 = vadd.f32 %v1602, %v1603
        %v1605 = vsel %vm1374, %v1524, 0.0
        %v1606 = vrot.slane %v1605, 4
        %v1607 = vadd.f32 %v1605, %v1606
        %v1608 = vrot.slane %v1607, 2
        %v1609 = vadd.f32 %v1607, %v1608
        %v1610 = vrot.slane %v1609, 1
        %v1611 = vadd.f32 %v1609, %v1610
        %v1612 = vsel %vm1374, %v1526, 0.0
        %v1613 = vrot.slane %v1612, 4
        %v1614 = vadd.f32 %v1612, %v1613
        %v1615 = vrot.slane %v1614, 2
        %v1616 = vadd.f32 %v1614, %v1615
        %v1617 = vrot.slane %v1616, 1
        %v1618 = vadd.f32 %v1616, %v1617
        %v1619 = vsel %vm1374, %v1528, 0.0
        %v1620 = vrot.slane %v1619, 4
        %v1621 = vadd.f32 %v1619, %v1620
        %v1622 = vrot.slane %v1621, 2
        %v1623 = vadd.f32 %v1621, %v1622
        %v1624 = vrot.slane %v1623, 1
        %v1625 = vadd.f32 %v1623, %v1624
        %v1626 = vsel %vm1374, %v1530, 0.0
        %v1627 = vrot.slane %v1626, 4
        %v1628 = vadd.f32 %v1626, %v1627
        %v1629 = vrot.slane %v1628, 2
        %v1630 = vadd.f32 %v1628, %v1629
        %v1631 = vrot.slane %v1630, 1
        %v1632 = vadd.f32 %v1630, %v1631
        %v1633 = vsel %vm1374, %v1532, 0.0
        %v1634 = vrot.slane %v1633, 4
        %v1635 = vadd.f32 %v1633, %v1634
        %v1636 = vrot.slane %v1635, 2
        %v1637 = vadd.f32 %v1635, %v1636
        %v1638 = vrot.slane %v1637, 1
        %v1639 = vadd.f32 %v1637, %v1638
        %v1640 = vsel %vm1374, %v1534, 0.0
        %v1641 = vrot.slane %v1640, 4
        %v1642 = vadd.f32 %v1640, %v1641
        %v1643 = vrot.slane %v1642, 2
        %v1644 = vadd.f32 %v1642, %v1643
        %v1645 = vrot.slane %v1644, 1
        %v1646 = vadd.f32 %v1644, %v1645
        %v1647 = vrcp.pop %v1541
        %v1648 = vrcp.pop %v1548
        %v1649 = vrcp.pop %v1555
        %v1650 = vrcp.pop %v1562
        %v1651 = vrcp.pop %v1569
        %v1652 = vrcp.pop %v1576
        %v1653 = vrcp.pop %v1583
        %v1654 = vrcp.pop %v1590
        %v1655 = vrcp.pop %v1597
        %v1656 = vrcp.pop %v1604
        %v1657 = vrcp.pop %v1611
        %v1658 = vrcp.pop %v1618
        %v1659 = vrcp.pop %v1625
        %v1660 = vrcp.pop %v1632
        %v1661 = vrcp.pop %v1639
        %v1662 = vrcp.pop %v1646
        %v1663 = vmul.f32 %v1504, %v1647
        %v1664 = vmul.f32 %v1506, %v1648
        %v1665 = vmul.f32 %v1508, %v1649
        %v1666 = vmul.f32 %v1510, %v1650
        %v1667 = vmul.f32 %v1512, %v1651
        %v1668 = vmul.f32 %v1514, %v1652
        %v1669 = vmul.f32 %v1516, %v1653
        %v1670 = vmul.f32 %v1518, %v1654
        %v1671 = vmul.f32 %v1520, %v1655
        %v1672 = vmul.f32 %v1522, %v1656
        %v1673 = vmul.f32 %v1524, %v1657
        %v1674 = vmul.f32 %v1526, %v1658
        %v1675 = vmul.f32 %v1528, %v1659
        %v1676 = vmul.f32 %v1530, %v1660
        %v1677 = vmul.f32 %v1532, %v1661
        %v1678 = vmul.f32 %v1534, %v1662
        %1680 = vset.pattern.permute.xlu0 0
        %1681 = vperm.xlu0 %1680, %v1663
        %v1682 = vpop.permute.xlu0 %1681
        %1685 = vset.pattern.permute.xlu0 0
        %1686 = vperm.xlu0 %1685, %v1664
        %v1687 = vpop.permute.xlu0 %1686
        %1690 = vset.pattern.permute.xlu0 0
        %1691 = vperm.xlu0 %1690, %v1665
        %v1692 = vpop.permute.xlu0 %1691
        %1695 = vset.pattern.permute.xlu0 0
        %1696 = vperm.xlu0 %1695, %v1666
        %v1697 = vpop.permute.xlu0 %1696
        %1700 = vset.pattern.permute.xlu0 0
        %1701 = vperm.xlu0 %1700, %v1667
        %v1702 = vpop.permute.xlu0 %1701
        %1705 = vset.pattern.permute.xlu0 0
        %1706 = vperm.xlu0 %1705, %v1668
        %v1707 = vpop.permute.xlu0 %1706
        %1710 = vset.pattern.permute.xlu0 0
        %1711 = vperm.xlu0 %1710, %v1669
        %v1712 = vpop.permute.xlu0 %1711
        %1715 = vset.pattern.permute.xlu0 0
        %1716 = vperm.xlu0 %1715, %v1670
        %v1717 = vpop.permute.xlu0 %1716
        %1720 = vset.pattern.permute.xlu0 0
        %1721 = vperm.xlu0 %1720, %v1671
        %v1722 = vpop.permute.xlu0 %1721
        %1725 = vset.pattern.permute.xlu0 0
        %1726 = vperm.xlu0 %1725, %v1672
        %v1727 = vpop.permute.xlu0 %1726
        %1730 = vset.pattern.permute.xlu0 0
        %1731 = vperm.xlu0 %1730, %v1673
        %v1732 = vpop.permute.xlu0 %1731
        %1735 = vset.pattern.permute.xlu0 0
        %1736 = vperm.xlu0 %1735, %v1674
        %v1737 = vpop.permute.xlu0 %1736
        %1740 = vset.pattern.permute.xlu0 0
        %1741 = vperm.xlu0 %1740, %v1675
        %v1742 = vpop.permute.xlu0 %1741
        %1745 = vset.pattern.permute.xlu0 0
        %1746 = vperm.xlu0 %1745, %v1676
        %v1747 = vpop.permute.xlu0 %1746
        %1750 = vset.pattern.permute.xlu0 0
        %1751 = vperm.xlu0 %1750, %v1677
        %v1752 = vpop.permute.xlu0 %1751
        %1755 = vset.pattern.permute.xlu0 0
        %1756 = vperm.xlu0 %1755, %v1678
        %v1757 = vpop.permute.xlu0 %1756
        %v1759 = vmul.f32 %v939, %v1682
        %v1760 = vmul.f32 %v940, %v1687
        %v1761 = vmul.f32 %v941, %v1692
        %v1762 = vmul.f32 %v942, %v1697
        %v1763 = vmul.f32 %v943, %v1702
        %v1764 = vmul.f32 %v944, %v1707
        %v1765 = vmul.f32 %v945, %v1712
        %v1766 = vmul.f32 %v946, %v1717
        %v1767 = vmul.f32 %v947, %v1722
        %v1768 = vmul.f32 %v948, %v1727
        %v1769 = vmul.f32 %v949, %v1732
        %v1770 = vmul.f32 %v950, %v1737
        %v1771 = vmul.f32 %v951, %v1742
        %v1772 = vmul.f32 %v952, %v1747
        %v1773 = vmul.f32 %v953, %v1752
        %v1774 = vmul.f32 %v954, %v1757
        %v1775 = vrot.slane %v1759, 4
        %v1776 = vadd.f32 %v1759, %v1775
        %v1777 = vrot.slane %v1776, 2
        %v1778 = vadd.f32 %v1776, %v1777
        %v1779 = vrot.slane %v1778, 1
        %v1780 = vadd.f32 %v1778, %v1779
        %v1781 = vrot.slane %v1760, 4
        %v1782 = vadd.f32 %v1760, %v1781
        %v1783 = vrot.slane %v1782, 2
        %v1784 = vadd.f32 %v1782, %v1783
        %v1785 = vrot.slane %v1784, 1
        %v1786 = vadd.f32 %v1784, %v1785
        %v1787 = vrot.slane %v1761, 4
        %v1788 = vadd.f32 %v1761, %v1787
        %v1789 = vrot.slane %v1788, 2
        %v1790 = vadd.f32 %v1788, %v1789
        %v1791 = vrot.slane %v1790, 1
        %v1792 = vadd.f32 %v1790, %v1791
        %v1793 = vrot.slane %v1762, 4
        %v1794 = vadd.f32 %v1762, %v1793
        %v1795 = vrot.slane %v1794, 2
        %v1796 = vadd.f32 %v1794, %v1795
        %v1797 = vrot.slane %v1796, 1
        %v1798 = vadd.f32 %v1796, %v1797
        %v1799 = vrot.slane %v1763, 4
        %v1800 = vadd.f32 %v1763, %v1799
        %v1801 = vrot.slane %v1800, 2
        %v1802 = vadd.f32 %v1800, %v1801
        %v1803 = vrot.slane %v1802, 1
        %v1804 = vadd.f32 %v1802, %v1803
        %v1805 = vrot.slane %v1764, 4
        %v1806 = vadd.f32 %v1764, %v1805
        %v1807 = vrot.slane %v1806, 2
        %v1808 = vadd.f32 %v1806, %v1807
        %v1809 = vrot.slane %v1808, 1
        %v1810 = vadd.f32 %v1808, %v1809
        %v1811 = vrot.slane %v1765, 4
        %v1812 = vadd.f32 %v1765, %v1811
        %v1813 = vrot.slane %v1812, 2
        %v1814 = vadd.f32 %v1812, %v1813
        %v1815 = vrot.slane %v1814, 1
        %v1816 = vadd.f32 %v1814, %v1815
        %v1817 = vrot.slane %v1766, 4
        %v1818 = vadd.f32 %v1766, %v1817
        %v1819 = vrot.slane %v1818, 2
        %v1820 = vadd.f32 %v1818, %v1819
        %v1821 = vrot.slane %v1820, 1
        %v1822 = vadd.f32 %v1820, %v1821
        %v1823 = vrot.slane %v1767, 4
        %v1824 = vadd.f32 %v1767, %v1823
        %v1825 = vrot.slane %v1824, 2
        %v1826 = vadd.f32 %v1824, %v1825
        %v1827 = vrot.slane %v1826, 1
        %v1828 = vadd.f32 %v1826, %v1827
        %v1829 = vrot.slane %v1768, 4
        %v1830 = vadd.f32 %v1768, %v1829
        %v1831 = vrot.slane %v1830, 2
        %v1832 = vadd.f32 %v1830, %v1831
        %v1833 = vrot.slane %v1832, 1
        %v1834 = vadd.f32 %v1832, %v1833
        %v1835 = vrot.slane %v1769, 4
        %v1836 = vadd.f32 %v1769, %v1835
        %v1837 = vrot.slane %v1836, 2
        %v1838 = vadd.f32 %v1836, %v1837
        %v1839 = vrot.slane %v1838, 1
        %v1840 = vadd.f32 %v1838, %v1839
        %v1841 = vrot.slane %v1770, 4
        %v1842 = vadd.f32 %v1770, %v1841
        %v1843 = vrot.slane %v1842, 2
        %v1844 = vadd.f32 %v1842, %v1843
        %v1845 = vrot.slane %v1844, 1
        %v1846 = vadd.f32 %v1844, %v1845
        %v1847 = vrot.slane %v1771, 4
        %v1848 = vadd.f32 %v1771, %v1847
        %v1849 = vrot.slane %v1848, 2
        %v1850 = vadd.f32 %v1848, %v1849
        %v1851 = vrot.slane %v1850, 1
        %v1852 = vadd.f32 %v1850, %v1851
        %v1853 = vrot.slane %v1772, 4
        %v1854 = vadd.f32 %v1772, %v1853
        %v1855 = vrot.slane %v1854, 2
        %v1856 = vadd.f32 %v1854, %v1855
        %v1857 = vrot.slane %v1856, 1
        %v1858 = vadd.f32 %v1856, %v1857
        %v1859 = vrot.slane %v1773, 4
        %v1860 = vadd.f32 %v1773, %v1859
        %v1861 = vrot.slane %v1860, 2
        %v1862 = vadd.f32 %v1860, %v1861
        %v1863 = vrot.slane %v1862, 1
        %v1864 = vadd.f32 %v1862, %v1863
        %v1865 = vrot.slane %v1774, 4
        %v1866 = vadd.f32 %v1774, %v1865
        %v1867 = vrot.slane %v1866, 2
        %v1868 = vadd.f32 %v1866, %v1867
        %v1869 = vrot.slane %v1868, 1
        %v1870 = vadd.f32 %v1868, %v1869
        %vm1887 = vcmask 1041409
        %v1888 = vsel %vm1887, %v1786, %v1780
        %vm1889 = vcmask 1042434
        %v1890 = vsel %vm1889, %v1792, %v1888
        %vm1891 = vcmask 1043459
        %v1892 = vsel %vm1891, %v1798, %v1890
        %vm1893 = vcmask 1044484
        %v1894 = vsel %vm1893, %v1804, %v1892
        %vm1895 = vcmask 1045509
        %v1896 = vsel %vm1895, %v1810, %v1894
        %vm1897 = vcmask 1046534
        %v1898 = vsel %vm1897, %v1816, %v1896
        %vm1899 = vcmask 1047559
        %v1900 = vsel %vm1899, %v1822, %v1898
        %v1901 = vsel %vm1887, %v1834, %v1828
        %v1902 = vsel %vm1889, %v1840, %v1901
        %v1903 = vsel %vm1891, %v1846, %v1902
        %v1904 = vsel %vm1893, %v1852, %v1903
        %v1905 = vsel %vm1895, %v1858, %v1904
        %v1906 = vsel %vm1897, %v1864, %v1905
        %v1907 = vsel %vm1899, %v1870, %v1906
        %1910 = vst [vmem:[%s316] sm:$0xff] %v1900
        %1911 = vst [vmem:[%s316 + $0x8] sm:$0xff] %v1907
        %s1912 = sand.u32 %s209, 1
        %s1913 = scalar_lea.sflag [#allocation4], %s1912
        %s1914 = sand.u32 %s209, 1
        %s1915 = smul.addr %s1914, 16
        %s1916 = scalar_lea.vmem [#allocation3], %s1915
        // Predicated region
        $region53: #{cnn_sequence_embedding.1} parent=51 // pred_check
          %p1917 = pneg %p219
        $region54: #{cnn_sequence_embedding.1} parent=51 // pred_check_branch
          %1919 = sbr.rel (%p1917) target = $region56
        $region55: #{cnn_sequence_embedding.1} parent=51 // pred_region
          %s1920 = smul.u32 2, %s23
          %s1922 = ssub.s32 256, 256
          %1923 = vsyncadd %s1913, %s1922
          %s1924 = smul.addr %s1920, 128
          %s1925 = scalar_lea.hbm %s8, %s1924
          %s1926 = sshll.u32 %s1916, 4
          %s1927 = int_to_ptr.vmem [resolvable:$true] %s1926
          %1932 = dma.vmem_to_hbm [thread:$0]  %s1927, 256, %s1925, %s1913, 128, 128, 8
        $region56: #{cnn_sequence_embedding.1} parent=51 // pred_fallthru
          _
      $region52: #{cnn_sequence_embedding.1} parent=5 // pred_fallthru
        _
      %p1933 = scmp.le.s32.totalorder 2, %s18
      // Predicated region
      $region57: #{cnn_sequence_embedding.1} parent=5 // pred_check
        %p1934 = pneg %p1933
      $region58: #{cnn_sequence_embedding.1} parent=5 // pred_check_branch
        %1936 = sbr.rel (%p1934) target = $region60
      $region59: #{cnn_sequence_embedding.1} parent=5 // pred_region
        %s1937 = ssub.s32 %s18, 2
        // Predicated region
        $region61: #{cnn_sequence_embedding.1} parent=59 // pred_check
          %p1938 = pneg %p225
        $region62: #{cnn_sequence_embedding.1} parent=59 // pred_check_branch
          %1940 = sbr.rel (%p1938) target = $region64
        $region63: #{cnn_sequence_embedding.1} parent=59 // pred_region
          %s1941 = sand.u32 %s210, 1
          %s1942 = scalar_lea.sflag [#allocation4], %s1941
          %s1943 = sand.u32 %s210, 1
          %s1944 = smul.addr %s1943, 16
          %s1945 = scalar_lea.vmem [#allocation3], %s1944
          %1946 = dma.done %s1942, 256
        $region64: #{cnn_sequence_embedding.1} parent=59 // pred_fallthru
          _
      $region60: #{cnn_sequence_embedding.1} parent=5 // pred_fallthru
        _
    $region6: #{cnn_sequence_embedding.1} parent=1 // loop_footer
      %s22 = sadd.s32 1, %s18
    $region7: #{cnn_sequence_embedding.1} parent=1 // loop_footer_branch
      %17 = sbr.rel target = $region3
    $region8: #{cnn_sequence_embedding.1} parent=1 // loop_exit
      _
    %1947 = vsyncpa [#allocation4], 1
    %s1948 = scalar_lea.sflag [#allocation4], 1
    %1949 = vsyncpa %s1948, 1

</llo_original>
